<compile_context>
chip_gen: v5e
topology: v5e:2x2
jax: 0.10.0
libtpu: 0.0.40
codegen_flags: <defaults>
</compile_context>

<pallas_src>
import jax
import jax.numpy as jnp
from jax import lax
from jax.experimental import pallas as pl
from jax.experimental.pallas import tpu as pltpu

TIMES = 5                        # matches PoolingNet_R(times=5)
TF_PREF = 2048                   # F (reduction) tile preference
TK_PREF = 512                    # K tile preference (>=2 K steps at K_pad=1024)
VMEM_LIMIT = 48 * 1024 * 1024    # safe on v5e/v6e (128 MiB) and v7x (64 MiB)


# ---------------------------------------------------------------------------
# Residual max-pool stack: x <- maxpool3x3(s=1, p=1)(x) + x, repeated TIMES
# times, fused in one kernel. Operates on channels-last (H, W, cb) f32 blocks:
# channels map to lanes (dense for cb >= 128), W maps to sublanes, H is an
# outer dim whose shifts are free static slices.
# ---------------------------------------------------------------------------
def pool_residual_kernel(x_ref, o_ref):
    x = x_ref[...]                                  # (H, W, cb)
    H, W, cb = x.shape
    neg = jnp.float32(-jnp.inf)

    # Horizontal boundary masks: computed once per block at broadcastable
    # (1, W, 1) shape and reused across all TIMES iterations.
    ci = lax.broadcasted_iota(jnp.int32, (1, W, 1), dimension=1)
    left = ci == 0
    right = ci == W - 1

    neg_row = jnp.full((1, W, cb), neg, dtype=x.dtype)

    for _ in range(TIMES):
        # --- vertical (H) pass: outer-dim static slices, pure VPU max ------
        up = jnp.concatenate([x[1:], neg_row], axis=0)    # up[i]  = x[i+1]
        dn = jnp.concatenate([neg_row, x[:-1]], axis=0)   # dn[i]  = x[i-1]
        mh = jnp.maximum(jnp.maximum(up, x), dn)
        # --- horizontal (W / sublane) pass: XLU roll + broadcast masks -----
        lf = pltpu.roll(mh, shift=W - 1, axis=1)          # lf[:,j] = mh[:,j+1]
        lf = jnp.where(right, neg, lf)
        rt = pltpu.roll(mh, shift=1, axis=1)              # rt[:,j] = mh[:,j-1]
        rt = jnp.where(left, neg, rt)
        x = jnp.maximum(jnp.maximum(lf, mh), rt) + x      # pool + residual

    o_ref[...] = x


# ---------------------------------------------------------------------------
# Tiled classifier: out[N, K] = x[N, F] @ w_t[F, K] + b[K]
# grid = (K/tK, F/tF); F (reduction) is the last grid axis; the weight is
# pre-transposed in the wrapper to (F, K), so the contraction needs no
# in-kernel transpose. The f32 output block is the accumulator.
# ---------------------------------------------------------------------------
def linear_kernel(x_ref, w_ref, b_ref, o_ref):
    f = pl.program_id(1)

    @pl.when(f == 0)
    def _():
        # Initialize the resident f32 output block with the broadcast bias.
        o_ref[...] = jnp.broadcast_to(b_ref[...], o_ref.shape)

    # Cast the small activation tile to the streamed weight dtype (bf16 by
    # default) so the MXU runs a native low-precision matmul; accumulation
    # stays f32 in o_ref.
    x = x_ref[...].astype(w_ref.dtype)
    o_ref[...] += jnp.dot(x, w_ref[...], preferred_element_type=jnp.float32)


# ---------------------------------------------------------------------------
# Tiling helpers
# ---------------------------------------------------------------------------
def _pick_channel_block(nc, preferred=256):
    """Largest multiple of 128 that divides nc and is <= preferred; prefers at
    least two grid steps so the 'parallel' axis can shard across TensorCores.
    Falls back to the full dimension when nc is not 128-aligned."""
    if nc % 128 != 0:
        return nc
    pref = min(preferred, nc // 2 if nc >= 256 else nc)
    cb = max(128, (pref // 128) * 128)
    while nc % cb != 0:
        cb -= 128
    return cb


def _pick_tile(total, preferred, mult=128):
    """Largest multiple of `mult` that divides `total` and is <= preferred.
    Falls back to the full dimension if `total` is not a multiple of `mult`
    (correct, but may be lane-misaligned / VMEM-heavy for awkward shapes)."""
    if total % mult != 0:
        return total
    t = max(mult, (min(preferred, total) // mult) * mult)
    while total % t != 0:
        t -= mult
    return t


# ---------------------------------------------------------------------------
# Forward pass
# ---------------------------------------------------------------------------
def poolingnet_r_forward(x_nchw, w, b, *, weight_dtype=jnp.bfloat16,
                         tile_f=None, tile_k=None):
    """x_nchw: (N, C, H, W) f32; w: (K, C*H*W) f32 (PyTorch Linear layout); b: (K,)."""
    N, C, H, W = x_nchw.shape
    K = w.shape[0]
    F = C * H * W
    NC = N * C

    # ---- pooling stage: channels-last (H, W, NC), grid over channel chunks ----
    x_cl = jnp.transpose(x_nchw.reshape(NC, H, W), (1, 2, 0))       # (H, W, NC)
    cb = _pick_channel_block(NC, preferred=256)

    pooled_cl = pl.pallas_call(
        pool_residual_kernel,
        out_shape=jax.ShapeDtypeStruct((H, W, NC), jnp.float32),
        grid=(NC // cb,),
        in_specs=[pl.BlockSpec((H, W, cb), lambda i: (0, 0, i))],
        out_specs=pl.BlockSpec((H, W, cb), lambda i: (0, 0, i)),
        compiler_params=pltpu.CompilerParams(
            dimension_semantics=("parallel",),
            vmem_limit_bytes=VMEM_LIMIT),
    )(x_cl)

    # torch.flatten(x, 1) on NCHW -> (N, C*H*W), C-major; transpose back first.
    feat = jnp.transpose(pooled_cl, (2, 0, 1)).reshape(N, F)

    # ---- classifier stage: transpose-free, bf16-streamed, tiled matmul ----
    # Pre-transpose the weight once to (F, K) and pad K to a multiple of 128
    # for lane-dense weight/output tiles. At production scale both are
    # one-time weight-preprocessing steps.
    K_pad = ((K + 127) // 128) * 128
    w_t = w.T                                            # (F, K)
    if K_pad != K:
        w_t = jnp.pad(w_t, ((0, 0), (0, K_pad - K)))
        b_p = jnp.pad(b, (0, K_pad - K))
    else:
        b_p = b
    w_t = w_t.astype(weight_dtype)                       # stream bf16 by default
    b_p = b_p.reshape(1, K_pad).astype(jnp.float32)

    tF = _pick_tile(F, tile_f if tile_f is not None else TF_PREF)
    tK = _pick_tile(K_pad, tile_k if tile_k is not None else TK_PREF)

    # Note: for large production batches an extra "parallel" N grid axis with
    # a tN block would keep activation/output tiles bounded as N grows.
    out_p = pl.pallas_call(
        linear_kernel,
        out_shape=jax.ShapeDtypeStruct((N, K_pad), jnp.float32),
        grid=(K_pad // tK, F // tF),                     # reduction (F) axis last
        in_specs=[
            pl.BlockSpec((N, tF), lambda k, f: (0, f)),   # activations
            pl.BlockSpec((tF, tK), lambda k, f: (f, k)),  # weights, (F, K) layout
            pl.BlockSpec((1, tK), lambda k, f: (0, k)),   # bias
        ],
        out_specs=pl.BlockSpec((N, tK), lambda k, f: (0, k)),
        compiler_params=pltpu.CompilerParams(
            dimension_semantics=("parallel", "arbitrary"),
            vmem_limit_bytes=VMEM_LIMIT),
    )(feat, w_t, b_p)

    return out_p[:, :K]


# ---------------------------------------------------------------------------
# Pure-JAX reference of the PyTorch forward (for a correctness check).
# ---------------------------------------------------------------------------
def _reference_forward(x_nchw, w, b):
    x = x_nchw
    for _ in range(TIMES):
        p = lax.reduce_window(
            x, -jnp.inf, lax.max,
            window_dimensions=(1, 1, 3, 3),
            window_strides=(1, 1, 1, 1),
            padding=((0, 0), (0, 0), (1, 1), (1, 1)))
        x = p + x
    feat = x.reshape(x.shape[0], -1)
    return feat @ w.T + b


if __name__ == "__main__":
    # Small shapes consistent with the forward pass:
    # original module uses (N, 64, 56, 56) and Linear(56*56*64, 1000);
    # here: (N, C, H, W) = (2, 4, 16, 16) and Linear(C*H*W=1024, num_classes=16).
    N, C, H, W = 2, 4, 16, 16
    num_classes = 16
    F = C * H * W

    key = jax.random.PRNGKey(0)
    kx, kw, kb = jax.random.split(key, 3)
    x = jax.random.normal(kx, (N, C, H, W), dtype=jnp.float32)

    # Deterministic PyTorch-style Linear init: U(-1/sqrt(F), 1/sqrt(F)).
    bound = 1.0 / (F ** 0.5)
    w = jax.random.uniform(kw, (num_classes, F), jnp.float32, -bound, bound)
    b = jax.random.uniform(kb, (num_classes,), jnp.float32, -bound, bound)

    ref = _reference_forward(x, w, b)

    # 1) default path: bf16 weight streaming (classifier is HBM-bound).
    out = jax.block_until_ready(poolingnet_r_forward(x, w, b))
    assert out.shape == (N, num_classes)
    rel = float(jnp.max(jnp.abs(out - ref)) / (jnp.max(jnp.abs(ref)) + 1e-6))
    assert rel < 3e-2, f"bf16-weight mismatch vs reference: rel={rel}"

    # 2) f32 weights + small tiles: exact check of the multi-step F reduction
    #    / bias-initialized output-accumulator path.
    out2 = jax.block_until_ready(
        poolingnet_r_forward(x, w, b, weight_dtype=jnp.float32,
                             tile_f=256, tile_k=128))
    assert out2.shape == (N, num_classes)
    assert jnp.allclose(out2, ref, atol=2e-3, rtol=2e-3), "mismatch vs reference (f32)"

    print("KERNEL_OK")
</pallas_src>

<mosaic_0001>
module attributes {stable_mosaic.version = 11 : i64} {
  func.func @pool_residual_kernel(%arg0: i32, %arg1: memref<16x16x8xf32, #tpu.memory_space<vmem>>, %arg2: memref<16x16x8xf32, #tpu.memory_space<vmem>>) attributes {dimension_semantics = [#tpu.dimension_semantics<parallel>], iteration_bounds = array<i64: 1>, scalar_prefetch = 0 : i64, scratch_operands = 0 : i64, tpu.core_type = #tpu.core_type<tc>, window_params = [{transform_indices = @transform_0, window_bounds = array<i64: 16, 16, 8>}, {transform_indices = @transform_1, window_bounds = array<i64: 16, 16, 8>}]} {
    %c0 = arith.constant 0 : index
    %c0_0 = arith.constant 0 : index
    %c0_1 = arith.constant 0 : index
    %0 = vector.load %arg1[%c0, %c0_0, %c0_1] : memref<16x16x8xf32, #tpu.memory_space<vmem>>, vector<16x16x8xf32>
    %1 = tpu.iota {dimensions = array<i32: 1>} : vector<1x16x1xi32>
    %c0_i32 = arith.constant 0 : i32
    %2 = vector.broadcast %c0_i32 : i32 to vector<1x16x1xi32>
    %3 = arith.cmpi eq, %1, %2 : vector<1x16x1xi32>
    %c15_i32 = arith.constant 15 : i32
    %4 = vector.broadcast %c15_i32 : i32 to vector<1x16x1xi32>
    %5 = arith.cmpi eq, %1, %4 : vector<1x16x1xi32>
    %cst = arith.constant 0xFF800000 : f32
    %6 = vector.broadcast %cst : f32 to vector<1x16x8xf32>
    %7 = vector.extract_strided_slice %0 {offsets = [1, 0, 0], sizes = [15, 16, 8], strides = [1, 1, 1]} : vector<16x16x8xf32> to vector<15x16x8xf32>
    %8 = tpu.concatenate %7, %6 in 0 : vector<15x16x8xf32>, vector<1x16x8xf32> -> vector<16x16x8xf32>
    %9 = vector.extract_strided_slice %0 {offsets = [0, 0, 0], sizes = [15, 16, 8], strides = [1, 1, 1]} : vector<16x16x8xf32> to vector<15x16x8xf32>
    %10 = tpu.concatenate %6, %9 in 0 : vector<1x16x8xf32>, vector<15x16x8xf32> -> vector<16x16x8xf32>
    %11 = arith.maximumf %8, %0 : vector<16x16x8xf32>
    %12 = arith.maximumf %11, %10 : vector<16x16x8xf32>
    %c15_i32_2 = arith.constant 15 : i32
    %13 = tpu.dynamic_rotate %12 by %c15_i32_2 dim 1 : vector<16x16x8xf32>, i32 -> vector<16x16x8xf32>
    %cst_3 = arith.constant 0xFF800000 : f32
    %14 = vector.shape_cast %5 : vector<1x16x1xi1> to vector<1x16x1xi1>
    %15 = vector.broadcast %14 : vector<1x16x1xi1> to vector<16x16x8xi1>
    %16 = vector.broadcast %cst_3 : f32 to vector<16x16x8xf32>
    %17 = arith.select %15, %16, %13 : vector<16x16x8xi1>, vector<16x16x8xf32>
    %c1_i32 = arith.constant 1 : i32
    %18 = tpu.dynamic_rotate %12 by %c1_i32 dim 1 : vector<16x16x8xf32>, i32 -> vector<16x16x8xf32>
    %cst_4 = arith.constant 0xFF800000 : f32
    %19 = vector.shape_cast %3 : vector<1x16x1xi1> to vector<1x16x1xi1>
    %20 = vector.broadcast %19 : vector<1x16x1xi1> to vector<16x16x8xi1>
    %21 = vector.broadcast %cst_4 : f32 to vector<16x16x8xf32>
    %22 = arith.select %20, %21, %18 : vector<16x16x8xi1>, vector<16x16x8xf32>
    %23 = arith.maximumf %17, %12 : vector<16x16x8xf32>
    %24 = arith.maximumf %23, %22 : vector<16x16x8xf32>
    %25 = arith.addf %24, %0 : vector<16x16x8xf32>
    %26 = vector.extract_strided_slice %25 {offsets = [1, 0, 0], sizes = [15, 16, 8], strides = [1, 1, 1]} : vector<16x16x8xf32> to vector<15x16x8xf32>
    %27 = tpu.concatenate %26, %6 in 0 : vector<15x16x8xf32>, vector<1x16x8xf32> -> vector<16x16x8xf32>
    %28 = vector.extract_strided_slice %25 {offsets = [0, 0, 0], sizes = [15, 16, 8], strides = [1, 1, 1]} : vector<16x16x8xf32> to vector<15x16x8xf32>
    %29 = tpu.concatenate %6, %28 in 0 : vector<1x16x8xf32>, vector<15x16x8xf32> -> vector<16x16x8xf32>
    %30 = arith.maximumf %27, %25 : vector<16x16x8xf32>
    %31 = arith.maximumf %30, %29 : vector<16x16x8xf32>
    %c15_i32_5 = arith.constant 15 : i32
    %32 = tpu.dynamic_rotate %31 by %c15_i32_5 dim 1 : vector<16x16x8xf32>, i32 -> vector<16x16x8xf32>
    %cst_6 = arith.constant 0xFF800000 : f32
    %33 = vector.shape_cast %5 : vector<1x16x1xi1> to vector<1x16x1xi1>
    %34 = vector.broadcast %33 : vector<1x16x1xi1> to vector<16x16x8xi1>
    %35 = vector.broadcast %cst_6 : f32 to vector<16x16x8xf32>
    %36 = arith.select %34, %35, %32 : vector<16x16x8xi1>, vector<16x16x8xf32>
    %c1_i32_7 = arith.constant 1 : i32
    %37 = tpu.dynamic_rotate %31 by %c1_i32_7 dim 1 : vector<16x16x8xf32>, i32 -> vector<16x16x8xf32>
    %cst_8 = arith.constant 0xFF800000 : f32
    %38 = vector.shape_cast %3 : vector<1x16x1xi1> to vector<1x16x1xi1>
    %39 = vector.broadcast %38 : vector<1x16x1xi1> to vector<16x16x8xi1>
    %40 = vector.broadcast %cst_8 : f32 to vector<16x16x8xf32>
    %41 = arith.select %39, %40, %37 : vector<16x16x8xi1>, vector<16x16x8xf32>
    %42 = arith.maximumf %36, %31 : vector<16x16x8xf32>
    %43 = arith.maximumf %42, %41 : vector<16x16x8xf32>
    %44 = arith.addf %43, %25 : vector<16x16x8xf32>
    %45 = vector.extract_strided_slice %44 {offsets = [1, 0, 0], sizes = [15, 16, 8], strides = [1, 1, 1]} : vector<16x16x8xf32> to vector<15x16x8xf32>
    %46 = tpu.concatenate %45, %6 in 0 : vector<15x16x8xf32>, vector<1x16x8xf32> -> vector<16x16x8xf32>
    %47 = vector.extract_strided_slice %44 {offsets = [0, 0, 0], sizes = [15, 16, 8], strides = [1, 1, 1]} : vector<16x16x8xf32> to vector<15x16x8xf32>
    %48 = tpu.concatenate %6, %47 in 0 : vector<1x16x8xf32>, vector<15x16x8xf32> -> vector<16x16x8xf32>
    %49 = arith.maximumf %46, %44 : vector<16x16x8xf32>
    %50 = arith.maximumf %49, %48 : vector<16x16x8xf32>
    %c15_i32_9 = arith.constant 15 : i32
    %51 = tpu.dynamic_rotate %50 by %c15_i32_9 dim 1 : vector<16x16x8xf32>, i32 -> vector<16x16x8xf32>
    %cst_10 = arith.constant 0xFF800000 : f32
    %52 = vector.shape_cast %5 : vector<1x16x1xi1> to vector<1x16x1xi1>
    %53 = vector.broadcast %52 : vector<1x16x1xi1> to vector<16x16x8xi1>
    %54 = vector.broadcast %cst_10 : f32 to vector<16x16x8xf32>
    %55 = arith.select %53, %54, %51 : vector<16x16x8xi1>, vector<16x16x8xf32>
    %c1_i32_11 = arith.constant 1 : i32
    %56 = tpu.dynamic_rotate %50 by %c1_i32_11 dim 1 : vector<16x16x8xf32>, i32 -> vector<16x16x8xf32>
    %cst_12 = arith.constant 0xFF800000 : f32
    %57 = vector.shape_cast %3 : vector<1x16x1xi1> to vector<1x16x1xi1>
    %58 = vector.broadcast %57 : vector<1x16x1xi1> to vector<16x16x8xi1>
    %59 = vector.broadcast %cst_12 : f32 to vector<16x16x8xf32>
    %60 = arith.select %58, %59, %56 : vector<16x16x8xi1>, vector<16x16x8xf32>
    %61 = arith.maximumf %55, %50 : vector<16x16x8xf32>
    %62 = arith.maximumf %61, %60 : vector<16x16x8xf32>
    %63 = arith.addf %62, %44 : vector<16x16x8xf32>
    %64 = vector.extract_strided_slice %63 {offsets = [1, 0, 0], sizes = [15, 16, 8], strides = [1, 1, 1]} : vector<16x16x8xf32> to vector<15x16x8xf32>
    %65 = tpu.concatenate %64, %6 in 0 : vector<15x16x8xf32>, vector<1x16x8xf32> -> vector<16x16x8xf32>
    %66 = vector.extract_strided_slice %63 {offsets = [0, 0, 0], sizes = [15, 16, 8], strides = [1, 1, 1]} : vector<16x16x8xf32> to vector<15x16x8xf32>
    %67 = tpu.concatenate %6, %66 in 0 : vector<1x16x8xf32>, vector<15x16x8xf32> -> vector<16x16x8xf32>
    %68 = arith.maximumf %65, %63 : vector<16x16x8xf32>
    %69 = arith.maximumf %68, %67 : vector<16x16x8xf32>
    %c15_i32_13 = arith.constant 15 : i32
    %70 = tpu.dynamic_rotate %69 by %c15_i32_13 dim 1 : vector<16x16x8xf32>, i32 -> vector<16x16x8xf32>
    %cst_14 = arith.constant 0xFF800000 : f32
    %71 = vector.shape_cast %5 : vector<1x16x1xi1> to vector<1x16x1xi1>
    %72 = vector.broadcast %71 : vector<1x16x1xi1> to vector<16x16x8xi1>
    %73 = vector.broadcast %cst_14 : f32 to vector<16x16x8xf32>
    %74 = arith.select %72, %73, %70 : vector<16x16x8xi1>, vector<16x16x8xf32>
    %c1_i32_15 = arith.constant 1 : i32
    %75 = tpu.dynamic_rotate %69 by %c1_i32_15 dim 1 : vector<16x16x8xf32>, i32 -> vector<16x16x8xf32>
    %cst_16 = arith.constant 0xFF800000 : f32
    %76 = vector.shape_cast %3 : vector<1x16x1xi1> to vector<1x16x1xi1>
    %77 = vector.broadcast %76 : vector<1x16x1xi1> to vector<16x16x8xi1>
    %78 = vector.broadcast %cst_16 : f32 to vector<16x16x8xf32>
    %79 = arith.select %77, %78, %75 : vector<16x16x8xi1>, vector<16x16x8xf32>
    %80 = arith.maximumf %74, %69 : vector<16x16x8xf32>
    %81 = arith.maximumf %80, %79 : vector<16x16x8xf32>
    %82 = arith.addf %81, %63 : vector<16x16x8xf32>
    %83 = vector.extract_strided_slice %82 {offsets = [1, 0, 0], sizes = [15, 16, 8], strides = [1, 1, 1]} : vector<16x16x8xf32> to vector<15x16x8xf32>
    %84 = tpu.concatenate %83, %6 in 0 : vector<15x16x8xf32>, vector<1x16x8xf32> -> vector<16x16x8xf32>
    %85 = vector.extract_strided_slice %82 {offsets = [0, 0, 0], sizes = [15, 16, 8], strides = [1, 1, 1]} : vector<16x16x8xf32> to vector<15x16x8xf32>
    %86 = tpu.concatenate %6, %85 in 0 : vector<1x16x8xf32>, vector<15x16x8xf32> -> vector<16x16x8xf32>
    %87 = arith.maximumf %84, %82 : vector<16x16x8xf32>
    %88 = arith.maximumf %87, %86 : vector<16x16x8xf32>
    %c15_i32_17 = arith.constant 15 : i32
    %89 = tpu.dynamic_rotate %88 by %c15_i32_17 dim 1 : vector<16x16x8xf32>, i32 -> vector<16x16x8xf32>
    %cst_18 = arith.constant 0xFF800000 : f32
    %90 = vector.shape_cast %5 : vector<1x16x1xi1> to vector<1x16x1xi1>
    %91 = vector.broadcast %90 : vector<1x16x1xi1> to vector<16x16x8xi1>
    %92 = vector.broadcast %cst_18 : f32 to vector<16x16x8xf32>
    %93 = arith.select %91, %92, %89 : vector<16x16x8xi1>, vector<16x16x8xf32>
    %c1_i32_19 = arith.constant 1 : i32
    %94 = tpu.dynamic_rotate %88 by %c1_i32_19 dim 1 : vector<16x16x8xf32>, i32 -> vector<16x16x8xf32>
    %cst_20 = arith.constant 0xFF800000 : f32
    %95 = vector.shape_cast %3 : vector<1x16x1xi1> to vector<1x16x1xi1>
    %96 = vector.broadcast %95 : vector<1x16x1xi1> to vector<16x16x8xi1>
    %97 = vector.broadcast %cst_20 : f32 to vector<16x16x8xf32>
    %98 = arith.select %96, %97, %94 : vector<16x16x8xi1>, vector<16x16x8xf32>
    %99 = arith.maximumf %93, %88 : vector<16x16x8xf32>
    %100 = arith.maximumf %99, %98 : vector<16x16x8xf32>
    %101 = arith.addf %100, %82 : vector<16x16x8xf32>
    %c0_21 = arith.constant 0 : index
    %c0_22 = arith.constant 0 : index
    %c0_23 = arith.constant 0 : index
    %102 = vector.load %arg2[%c0_21, %c0_22, %c0_23] : memref<16x16x8xf32, #tpu.memory_space<vmem>>, vector<16x16x8xf32>
    tpu.vector_store %arg2[%c0_21, %c0_22, %c0_23], %101 {strides = array<i32>} : memref<16x16x8xf32, #tpu.memory_space<vmem>>, vector<16x16x8xf32>,
    return
  }
  func.func @transform_0(%arg0: i32) -> (i32, i32, i32) {
    %c0_i32 = arith.constant 0 : i32
    %c0_i32_0 = arith.constant 0 : i32
    %c0_i32_1 = arith.constant 0 : i32
    return %c0_i32, %c0_i32_0, %arg0 : i32, i32, i32
  }
  func.func @transform_1(%arg0: i32) -> (i32, i32, i32) {
    %c0_i32 = arith.constant 0 : i32
    %c0_i32_0 = arith.constant 0 : i32
    %c0_i32_1 = arith.constant 0 : i32
    return %c0_i32, %c0_i32_0, %arg0 : i32, i32, i32
  }
}

</mosaic_0001>

<llo_original>
// kernel: tpu_custom_call.1
$region0: #{tpu_custom_call.1}
  #allocation0 [shape = 'u32[]', space=smem, size = 0x4, offset = 0x4, fixed_abs, tag = 'smem constant byte address 0x4 - core index']
  #allocation1 [shape = 'u32[72,128]{1,0:T(1,128)}', space=vmem, size = 0x9000, scoped, tag = 'internal scratch']
  %s0 = inlined_call_operand.vmem [shape: f32[16,16,8], index: 0, kind: input, shape index: {}]
  %s1 = inlined_call_operand.vmem [shape: f32[16,16,8], index: 1, kind: output, shape index: {}]
  %s2 = sld [smem:[#allocation0]]
  $region14: #{tpu_custom_call.1} parent=0
    _
  %s4 = ssub.s32 1, %s2
  %s5 = scalar_select 0, %s4, %s2
  // Predicated region
  $region2: #{tpu_custom_call.1} parent=0 // pred_check
    _
  $region3: #{tpu_custom_call.1} parent=0 // pred_check_branch
    %7 = sbr.rel (0) target = $region5
  $region4: #{tpu_custom_call.1} parent=0 // pred_region
    _
  $region5: #{tpu_custom_call.1} parent=0 // pred_fallthru
    _
  %v8 = vld [vmem:[%s0] sm:$0xff]
  %v9 = vld [vmem:[%s0 + $0x8] sm:$0xff]
  %v10 = vld [vmem:[%s0 + $0x10] sm:$0xff]
  %v11 = vld [vmem:[%s0 + $0x18] sm:$0xff]
  %v12 = vld [vmem:[%s0 + $0x20] sm:$0xff]
  %v13 = vld [vmem:[%s0 + $0x28] sm:$0xff]
  %v14 = vld [vmem:[%s0 + $0x30] sm:$0xff]
  %v15 = vld [vmem:[%s0 + $0x38] sm:$0xff]
  %v16 = vld [vmem:[%s0 + $0x40] sm:$0xff]
  %v17 = vld [vmem:[%s0 + $0x48] sm:$0xff]
  %v18 = vld [vmem:[%s0 + $0x50] sm:$0xff]
  %v19 = vld [vmem:[%s0 + $0x58] sm:$0xff]
  %v20 = vld [vmem:[%s0 + $0x60] sm:$0xff]
  %v21 = vld [vmem:[%s0 + $0x68] sm:$0xff]
  %v22 = vld [vmem:[%s0 + $0x70] sm:$0xff]
  %v23 = vld [vmem:[%s0 + $0x78] sm:$0xff]
  %v24 = vld [vmem:[%s0 + $0x80] sm:$0xff]
  %v25 = vld [vmem:[%s0 + $0x88] sm:$0xff]
  %v26 = vld [vmem:[%s0 + $0x90] sm:$0xff]
  %v27 = vld [vmem:[%s0 + $0x98] sm:$0xff]
  %v28 = vld [vmem:[%s0 + $0xa0] sm:$0xff]
  %v29 = vld [vmem:[%s0 + $0xa8] sm:$0xff]
  %v30 = vld [vmem:[%s0 + $0xb0] sm:$0xff]
  %v31 = vld [vmem:[%s0 + $0xb8] sm:$0xff]
  %v32 = vld [vmem:[%s0 + $0xc0] sm:$0xff]
  %v33 = vld [vmem:[%s0 + $0xc8] sm:$0xff]
  %v34 = vld [vmem:[%s0 + $0xd0] sm:$0xff]
  %v35 = vld [vmem:[%s0 + $0xd8] sm:$0xff]
  %v36 = vld [vmem:[%s0 + $0xe0] sm:$0xff]
  %v37 = vld [vmem:[%s0 + $0xe8] sm:$0xff]
  %v38 = vld [vmem:[%s0 + $0xf0] sm:$0xff]
  %v39 = vld [vmem:[%s0 + $0xf8] sm:$0xff]
  %v40 = vlaneseq
  %v41 = vshrl.u32 %v40, 7
  %v42 = vadd.s32 %v41, 8
  %vm43 = vcmp.eq.s32.totalorder %v41, 0
  %vm44 = vcmp.eq.s32.totalorder %v42, 0
  %vm45 = vcmp.eq.s32.totalorder %v41, 15
  %vm46 = vcmp.eq.s32.totalorder %v42, 15
  %v47 = vmax.f32 %v10, %v8
  %v48 = vmax.f32 %v11, %v9
  %v49 = vmax.f32 %v12, %v10
  %v50 = vmax.f32 %v13, %v11
  %v51 = vmax.f32 %v14, %v12
  %v52 = vmax.f32 %v15, %v13
  %v53 = vmax.f32 %v16, %v14
  %v54 = vmax.f32 %v17, %v15
  %v55 = vmax.f32 %v18, %v16
  %v56 = vmax.f32 %v19, %v17
  %v57 = vmax.f32 %v20, %v18
  %v58 = vmax.f32 %v21, %v19
  %v59 = vmax.f32 %v22, %v20
  %v60 = vmax.f32 %v23, %v21
  %v61 = vmax.f32 %v24, %v22
  %v62 = vmax.f32 %v25, %v23
  %v63 = vmax.f32 %v26, %v24
  %v64 = vmax.f32 %v27, %v25
  %v65 = vmax.f32 %v28, %v26
  %v66 = vmax.f32 %v29, %v27
  %v67 = vmax.f32 %v30, %v28
  %v68 = vmax.f32 %v31, %v29
  %v69 = vmax.f32 %v32, %v30
  %v70 = vmax.f32 %v33, %v31
  %v71 = vmax.f32 %v34, %v32
  %v72 = vmax.f32 %v35, %v33
  %v73 = vmax.f32 %v36, %v34
  %v74 = vmax.f32 %v37, %v35
  %v75 = vmax.f32 %v38, %v36
  %v76 = vmax.f32 %v39, %v37
  %v77 = vmax.f32 %v49, %v8
  %v78 = vmax.f32 %v50, %v9
  %v79 = vmax.f32 %v51, %v10
  %v80 = vmax.f32 %v52, %v11
  %v81 = vmax.f32 %v53, %v12
  %v82 = vmax.f32 %v54, %v13
  %v83 = vmax.f32 %v55, %v14
  %v84 = vmax.f32 %v56, %v15
  %v85 = vmax.f32 %v57, %v16
  %v86 = vmax.f32 %v58, %v17
  %v87 = vmax.f32 %v59, %v18
  %v88 = vmax.f32 %v60, %v19
  %v89 = vmax.f32 %v61, %v20
  %v90 = vmax.f32 %v62, %v21
  %v91 = vmax.f32 %v63, %v22
  %v92 = vmax.f32 %v64, %v23
  %v93 = vmax.f32 %v65, %v24
  %v94 = vmax.f32 %v66, %v25
  %v95 = vmax.f32 %v67, %v26
  %v96 = vmax.f32 %v68, %v27
  %v97 = vmax.f32 %v69, %v28
  %v98 = vmax.f32 %v70, %v29
  %v99 = vmax.f32 %v71, %v30
  %v100 = vmax.f32 %v72, %v31
  %v101 = vmax.f32 %v73, %v32
  %v102 = vmax.f32 %v74, %v33
  %v103 = vmax.f32 %v75, %v34
  %v104 = vmax.f32 %v76, %v35
  %v105 = vrot.slane %v47, 1
  %v106 = vrot.slane %v77, 1
  %v107 = vrot.slane %v79, 1
  %v108 = vrot.slane %v81, 1
  %v109 = vrot.slane %v83, 1
  %v110 = vrot.slane %v85, 1
  %v111 = vrot.slane %v87, 1
  %v112 = vrot.slane %v89, 1
  %v113 = vrot.slane %v91, 1
  %v114 = vrot.slane %v93, 1
  %v115 = vrot.slane %v95, 1
  %v116 = vrot.slane %v97, 1
  %v117 = vrot.slane %v99, 1
  %v118 = vrot.slane %v101, 1
  %v119 = vrot.slane %v103, 1
  %v120 = vrot.slane %v75, 1
  %v121 = vrot.slane %v48, 1
  %v122 = vrot.slane %v78, 1
  %v123 = vrot.slane %v80, 1
  %v124 = vrot.slane %v82, 1
  %v125 = vrot.slane %v84, 1
  %v126 = vrot.slane %v86, 1
  %v127 = vrot.slane %v88, 1
  %v128 = vrot.slane %v90, 1
  %v129 = vrot.slane %v92, 1
  %v130 = vrot.slane %v94, 1
  %v131 = vrot.slane %v96, 1
  %v132 = vrot.slane %v98, 1
  %v133 = vrot.slane %v100, 1
  %v134 = vrot.slane %v102, 1
  %v135 = vrot.slane %v104, 1
  %v136 = vrot.slane %v76, 1
  %vm137 = vcmp.lt.s32.totalorder %v41, 7
  %v138 = vsel %vm137, %v105, %v121
  %v139 = vsel %vm137, %v106, %v122
  %v140 = vsel %vm137, %v107, %v123
  %v141 = vsel %vm137, %v108, %v124
  %v142 = vsel %vm137, %v109, %v125
  %v143 = vsel %vm137, %v110, %v126
  %v144 = vsel %vm137, %v111, %v127
  %v145 = vsel %vm137, %v112, %v128
  %v146 = vsel %vm137, %v113, %v129
  %v147 = vsel %vm137, %v114, %v130
  %v148 = vsel %vm137, %v115, %v131
  %v149 = vsel %vm137, %v116, %v132
  %v150 = vsel %vm137, %v117, %v133
  %v151 = vsel %vm137, %v118, %v134
  %v152 = vsel %vm137, %v119, %v135
  %v153 = vsel %vm137, %v120, %v136
  %v154 = vsel %vm137, %v121, %v105
  %v155 = vsel %vm137, %v122, %v106
  %v156 = vsel %vm137, %v123, %v107
  %v157 = vsel %vm137, %v124, %v108
  %v158 = vsel %vm137, %v125, %v109
  %v159 = vsel %vm137, %v126, %v110
  %v160 = vsel %vm137, %v127, %v111
  %v161 = vsel %vm137, %v128, %v112
  %v162 = vsel %vm137, %v129, %v113
  %v163 = vsel %vm137, %v130, %v114
  %v164 = vsel %vm137, %v131, %v115
  %v165 = vsel %vm137, %v132, %v116
  %v166 = vsel %vm137, %v133, %v117
  %v167 = vsel %vm137, %v134, %v118
  %v168 = vsel %vm137, %v135, %v119
  %v169 = vsel %vm137, %v136, %v120
  %v170 = vsel %vm45, 1, 0
  %v171 = vsel %vm46, 1, 0
  %vm172 = vcmp.eq.s32.totalorder %v170, 1
  %vm173 = vcmp.eq.s32.totalorder %v171, 1
  %v174 = vsel %vm172, -inf, %v138
  %v175 = vsel %vm173, -inf, %v154
  %v176 = vsel %vm172, -inf, %v139
  %v177 = vsel %vm173, -inf, %v155
  %v178 = vsel %vm172, -inf, %v140
  %v179 = vsel %vm173, -inf, %v156
  %v180 = vsel %vm172, -inf, %v141
  %v181 = vsel %vm173, -inf, %v157
  %v182 = vsel %vm172, -inf, %v142
  %v183 = vsel %vm173, -inf, %v158
  %v184 = vsel %vm172, -inf, %v143
  %v185 = vsel %vm173, -inf, %v159
  %v186 = vsel %vm172, -inf, %v144
  %v187 = vsel %vm173, -inf, %v160
  %v188 = vsel %vm172, -inf, %v145
  %v189 = vsel %vm173, -inf, %v161
  %v190 = vsel %vm172, -inf, %v146
  %v191 = vsel %vm173, -inf, %v162
  %v192 = vsel %vm172, -inf, %v147
  %v193 = vsel %vm173, -inf, %v163
  %v194 = vsel %vm172, -inf, %v148
  %v195 = vsel %vm173, -inf, %v164
  %v196 = vsel %vm172, -inf, %v149
  %v197 = vsel %vm173, -inf, %v165
  %v198 = vsel %vm172, -inf, %v150
  %v199 = vsel %vm173, -inf, %v166
  %v200 = vsel %vm172, -inf, %v151
  %v201 = vsel %vm173, -inf, %v167
  %v202 = vsel %vm172, -inf, %v152
  %v203 = vsel %vm173, -inf, %v168
  %v204 = vsel %vm172, -inf, %v153
  %v205 = vsel %vm173, -inf, %v169
  %v206 = vrot.slane %v47, 7
  %v207 = vrot.slane %v77, 7
  %v208 = vrot.slane %v79, 7
  %v209 = vrot.slane %v81, 7
  %v210 = vrot.slane %v83, 7
  %v211 = vrot.slane %v85, 7
  %v212 = vrot.slane %v87, 7
  %v213 = vrot.slane %v89, 7
  %v214 = vrot.slane %v91, 7
  %v215 = vrot.slane %v93, 7
  %v216 = vrot.slane %v95, 7
  %v217 = vrot.slane %v97, 7
  %v218 = vrot.slane %v99, 7
  %v219 = vrot.slane %v101, 7
  %v220 = vrot.slane %v103, 7
  %v221 = vrot.slane %v75, 7
  %v222 = vrot.slane %v48, 7
  %v223 = vrot.slane %v78, 7
  %v224 = vrot.slane %v80, 7
  %v225 = vrot.slane %v82, 7
  %v226 = vrot.slane %v84, 7
  %v227 = vrot.slane %v86, 7
  %v228 = vrot.slane %v88, 7
  %v229 = vrot.slane %v90, 7
  %v230 = vrot.slane %v92, 7
  %v231 = vrot.slane %v94, 7
  %v232 = vrot.slane %v96, 7
  %v233 = vrot.slane %v98, 7
  %v234 = vrot.slane %v100, 7
  %v235 = vrot.slane %v102, 7
  %v236 = vrot.slane %v104, 7
  %v237 = vrot.slane %v76, 7
  %vm238 = vcmp.lt.s32.totalorder %v41, 1
  %v239 = vsel %vm238, %v206, %v222
  %v240 = vsel %vm238, %v207, %v223
  %v241 = vsel %vm238, %v208, %v224
  %v242 = vsel %vm238, %v209, %v225
  %v243 = vsel %vm238, %v210, %v226
  %v244 = vsel %vm238, %v211, %v227
  %v245 = vsel %vm238, %v212, %v228
  %v246 = vsel %vm238, %v213, %v229
  %v247 = vsel %vm238, %v214, %v230
  %v248 = vsel %vm238, %v215, %v231
  %v249 = vsel %vm238, %v216, %v232
  %v250 = vsel %vm238, %v217, %v233
  %v251 = vsel %vm238, %v218, %v234
  %v252 = vsel %vm238, %v219, %v235
  %v253 = vsel %vm238, %v220, %v236
  %v254 = vsel %vm238, %v221, %v237
  %v255 = vsel %vm238, %v222, %v206
  %v256 = vsel %vm238, %v223, %v207
  %v257 = vsel %vm238, %v224, %v208
  %v258 = vsel %vm238, %v225, %v209
  %v259 = vsel %vm238, %v226, %v210
  %v260 = vsel %vm238, %v227, %v211
  %v261 = vsel %vm238, %v228, %v212
  %v262 = vsel %vm238, %v229, %v213
  %v263 = vsel %vm238, %v230, %v214
  %v264 = vsel %vm238, %v231, %v215
  %v265 = vsel %vm238, %v232, %v216
  %v266 = vsel %vm238, %v233, %v217
  %v267 = vsel %vm238, %v234, %v218
  %v268 = vsel %vm238, %v235, %v219
  %v269 = vsel %vm238, %v236, %v220
  %v270 = vsel %vm238, %v237, %v221
  %v271 = vsel %vm43, 1, 0
  %v272 = vsel %vm44, 1, 0
  %vm273 = vcmp.eq.s32.totalorder %v271, 1
  %vm274 = vcmp.eq.s32.totalorder %v272, 1
  %v275 = vsel %vm273, -inf, %v255
  %v276 = vsel %vm274, -inf, %v239
  %v277 = vsel %vm273, -inf, %v256
  %v278 = vsel %vm274, -inf, %v240
  %v279 = vsel %vm273, -inf, %v257
  %v280 = vsel %vm274, -inf, %v241
  %v281 = vsel %vm273, -inf, %v258
  %v282 = vsel %vm274, -inf, %v242
  %v283 = vsel %vm273, -inf, %v259
  %v284 = vsel %vm274, -inf, %v243
  %v285 = vsel %vm273, -inf, %v260
  %v286 = vsel %vm274, -inf, %v244
  %v287 = vsel %vm273, -inf, %v261
  %v288 = vsel %vm274, -inf, %v245
  %v289 = vsel %vm273, -inf, %v262
  %v290 = vsel %vm274, -inf, %v246
  %v291 = vsel %vm273, -inf, %v263
  %v292 = vsel %vm274, -inf, %v247
  %v293 = vsel %vm273, -inf, %v264
  %v294 = vsel %vm274, -inf, %v248
  %v295 = vsel %vm273, -inf, %v265
  %v296 = vsel %vm274, -inf, %v249
  %v297 = vsel %vm273, -inf, %v266
  %v298 = vsel %vm274, -inf, %v250
  %v299 = vsel %vm273, -inf, %v267
  %v300 = vsel %vm274, -inf, %v251
  %v301 = vsel %vm273, -inf, %v268
  %v302 = vsel %vm274, -inf, %v252
  %v303 = vsel %vm273, -inf, %v269
  %v304 = vsel %vm274, -inf, %v253
  %v305 = vsel %vm273, -inf, %v270
  %v306 = vsel %vm274, -inf, %v254
  %v307 = vmax.f32 %v174, %v47
  %v308 = vmax.f32 %v175, %v48
  %v309 = vmax.f32 %v176, %v77
  %v310 = vmax.f32 %v177, %v78
  %v311 = vmax.f32 %v178, %v79
  %v312 = vmax.f32 %v179, %v80
  %v313 = vmax.f32 %v180, %v81
  %v314 = vmax.f32 %v181, %v82
  %v315 = vmax.f32 %v182, %v83
  %v316 = vmax.f32 %v183, %v84
  %v317 = vmax.f32 %v184, %v85
  %v318 = vmax.f32 %v185, %v86
  %v319 = vmax.f32 %v186, %v87
  %v320 = vmax.f32 %v187, %v88
  %v321 = vmax.f32 %v188, %v89
  %v322 = vmax.f32 %v189, %v90
  %v323 = vmax.f32 %v190, %v91
  %v324 = vmax.f32 %v191, %v92
  %v325 = vmax.f32 %v192, %v93
  %v326 = vmax.f32 %v193, %v94
  %v327 = vmax.f32 %v194, %v95
  %v328 = vmax.f32 %v195, %v96
  %v329 = vmax.f32 %v196, %v97
  %v330 = vmax.f32 %v197, %v98
  %v331 = vmax.f32 %v198, %v99
  %v332 = vmax.f32 %v199, %v100
  %v333 = vmax.f32 %v200, %v101
  %v334 = vmax.f32 %v201, %v102
  %v335 = vmax.f32 %v202, %v103
  %v336 = vmax.f32 %v203, %v104
  %v337 = vmax.f32 %v204, %v75
  %v338 = vmax.f32 %v205, %v76
  %v339 = vmax.f32 %v307, %v275
  %v340 = vmax.f32 %v308, %v276
  %v341 = vmax.f32 %v309, %v277
  %v342 = vmax.f32 %v310, %v278
  %v343 = vmax.f32 %v311, %v279
  %v344 = vmax.f32 %v312, %v280
  %v345 = vmax.f32 %v313, %v281
  %v346 = vmax.f32 %v314, %v282
  %v347 = vmax.f32 %v315, %v283
  %v348 = vmax.f32 %v316, %v284
  %v349 = vmax.f32 %v317, %v285
  %v350 = vmax.f32 %v318, %v286
  %v351 = vmax.f32 %v319, %v287
  %v352 = vmax.f32 %v320, %v288
  %v353 = vmax.f32 %v321, %v289
  %v354 = vmax.f32 %v322, %v290
  %v355 = vmax.f32 %v323, %v291
  %v356 = vmax.f32 %v324, %v292
  %v357 = vmax.f32 %v325, %v293
  %v358 = vmax.f32 %v326, %v294
  %v359 = vmax.f32 %v327, %v295
  %v360 = vmax.f32 %v328, %v296
  %v361 = vmax.f32 %v329, %v297
  %v362 = vmax.f32 %v330, %v298
  %v363 = vmax.f32 %v331, %v299
  %v364 = vmax.f32 %v332, %v300
  %v365 = vmax.f32 %v333, %v301
  %v366 = vmax.f32 %v334, %v302
  %v367 = vmax.f32 %v335, %v303
  %v368 = vmax.f32 %v336, %v304
  %v369 = vmax.f32 %v337, %v305
  %v370 = vmax.f32 %v338, %v306
  %v371 = vadd.f32 %v339, %v8
  %v372 = vadd.f32 %v340, %v9
  %v373 = vadd.f32 %v341, %v10
  %v374 = vadd.f32 %v342, %v11
  %v375 = vadd.f32 %v343, %v12
  %v376 = vadd.f32 %v344, %v13
  %v377 = vadd.f32 %v345, %v14
  %v378 = vadd.f32 %v346, %v15
  %v379 = vadd.f32 %v347, %v16
  %v380 = vadd.f32 %v348, %v17
  %v381 = vadd.f32 %v349, %v18
  %v382 = vadd.f32 %v350, %v19
  %v383 = vadd.f32 %v351, %v20
  %v384 = vadd.f32 %v352, %v21
  %v385 = vadd.f32 %v353, %v22
  %v386 = vadd.f32 %v354, %v23
  %v387 = vadd.f32 %v355, %v24
  %v388 = vadd.f32 %v356, %v25
  %v389 = vadd.f32 %v357, %v26
  %v390 = vadd.f32 %v358, %v27
  %v391 = vadd.f32 %v359, %v28
  %v392 = vadd.f32 %v360, %v29
  %v393 = vadd.f32 %v361, %v30
  %v394 = vadd.f32 %v362, %v31
  %v395 = vadd.f32 %v363, %v32
  %v396 = vadd.f32 %v364, %v33
  %v397 = vadd.f32 %v365, %v34
  %v398 = vadd.f32 %v366, %v35
  %v399 = vadd.f32 %v367, %v36
  %v400 = vadd.f32 %v368, %v37
  %v401 = vadd.f32 %v369, %v38
  %v402 = vadd.f32 %v370, %v39
  %v403 = vmax.f32 %v373, %v371
  %v404 = vmax.f32 %v374, %v372
  %v405 = vmax.f32 %v375, %v373
  %v406 = vmax.f32 %v376, %v374
  %v407 = vmax.f32 %v377, %v375
  %v408 = vmax.f32 %v378, %v376
  %v409 = vmax.f32 %v379, %v377
  %v410 = vmax.f32 %v380, %v378
  %v411 = vmax.f32 %v381, %v379
  %v412 = vmax.f32 %v382, %v380
  %v413 = vmax.f32 %v383, %v381
  %v414 = vmax.f32 %v384, %v382
  %v415 = vmax.f32 %v385, %v383
  %v416 = vmax.f32 %v386, %v384
  %v417 = vmax.f32 %v387, %v385
  %v418 = vmax.f32 %v388, %v386
  %v419 = vmax.f32 %v389, %v387
  %v420 = vmax.f32 %v390, %v388
  %v421 = vmax.f32 %v391, %v389
  %v422 = vmax.f32 %v392, %v390
  %v423 = vmax.f32 %v393, %v391
  %v424 = vmax.f32 %v394, %v392
  %v425 = vmax.f32 %v395, %v393
  %v426 = vmax.f32 %v396, %v394
  %v427 = vmax.f32 %v397, %v395
  %v428 = vmax.f32 %v398, %v396
  %v429 = vmax.f32 %v399, %v397
  %v430 = vmax.f32 %v400, %v398
  %v431 = vmax.f32 %v401, %v399
  %v432 = vmax.f32 %v402, %v400
  %v433 = vmax.f32 %v405, %v371
  %v434 = vmax.f32 %v406, %v372
  %v435 = vmax.f32 %v407, %v373
  %v436 = vmax.f32 %v408, %v374
  %v437 = vmax.f32 %v409, %v375
  %v438 = vmax.f32 %v410, %v376
  %v439 = vmax.f32 %v411, %v377
  %v440 = vmax.f32 %v412, %v378
  %v441 = vmax.f32 %v413, %v379
  %v442 = vmax.f32 %v414, %v380
  %v443 = vmax.f32 %v415, %v381
  %v444 = vmax.f32 %v416, %v382
  %v445 = vmax.f32 %v417, %v383
  %v446 = vmax.f32 %v418, %v384
  %v447 = vmax.f32 %v419, %v385
  %v448 = vmax.f32 %v420, %v386
  %v449 = vmax.f32 %v421, %v387
  %v450 = vmax.f32 %v422, %v388
  %v451 = vmax.f32 %v423, %v389
  %v452 = vmax.f32 %v424, %v390
  %v453 = vmax.f32 %v425, %v391
  %v454 = vmax.f32 %v426, %v392
  %v455 = vmax.f32 %v427, %v393
  %v456 = vmax.f32 %v428, %v394
  %v457 = vmax.f32 %v429, %v395
  %v458 = vmax.f32 %v430, %v396
  %v459 = vmax.f32 %v431, %v397
  %v460 = vmax.f32 %v432, %v398
  %v461 = vrot.slane %v403, 1
  %v462 = vrot.slane %v433, 1
  %v463 = vrot.slane %v435, 1
  %v464 = vrot.slane %v437, 1
  %v465 = vrot.slane %v439, 1
  %v466 = vrot.slane %v441, 1
  %v467 = vrot.slane %v443, 1
  %v468 = vrot.slane %v445, 1
  %v469 = vrot.slane %v447, 1
  %v470 = vrot.slane %v449, 1
  %v471 = vrot.slane %v451, 1
  %v472 = vrot.slane %v453, 1
  %v473 = vrot.slane %v455, 1
  %v474 = vrot.slane %v457, 1
  %v475 = vrot.slane %v459, 1
  %v476 = vrot.slane %v431, 1
  %v477 = vrot.slane %v404, 1
  %v478 = vrot.slane %v434, 1
  %v479 = vrot.slane %v436, 1
  %v480 = vrot.slane %v438, 1
  %v481 = vrot.slane %v440, 1
  %v482 = vrot.slane %v442, 1
  %v483 = vrot.slane %v444, 1
  %v484 = vrot.slane %v446, 1
  %v485 = vrot.slane %v448, 1
  %v486 = vrot.slane %v450, 1
  %v487 = vrot.slane %v452, 1
  %v488 = vrot.slane %v454, 1
  %v489 = vrot.slane %v456, 1
  %v490 = vrot.slane %v458, 1
  %v491 = vrot.slane %v460, 1
  %v492 = vrot.slane %v432, 1
  %v493 = vsel %vm137, %v461, %v477
  %v494 = vsel %vm137, %v462, %v478
  %v495 = vsel %vm137, %v463, %v479
  %v496 = vsel %vm137, %v464, %v480
  %v497 = vsel %vm137, %v465, %v481
  %v498 = vsel %vm137, %v466, %v482
  %v499 = vsel %vm137, %v467, %v483
  %v500 = vsel %vm137, %v468, %v484
  %v501 = vsel %vm137, %v469, %v485
  %v502 = vsel %vm137, %v470, %v486
  %v503 = vsel %vm137, %v471, %v487
  %v504 = vsel %vm137, %v472, %v488
  %v505 = vsel %vm137, %v473, %v489
  %v506 = vsel %vm137, %v474, %v490
  %v507 = vsel %vm137, %v475, %v491
  %v508 = vsel %vm137, %v476, %v492
  %v509 = vsel %vm137, %v477, %v461
  %v510 = vsel %vm137, %v478, %v462
  %v511 = vsel %vm137, %v479, %v463
  %v512 = vsel %vm137, %v480, %v464
  %v513 = vsel %vm137, %v481, %v465
  %v514 = vsel %vm137, %v482, %v466
  %v515 = vsel %vm137, %v483, %v467
  %v516 = vsel %vm137, %v484, %v468
  %v517 = vsel %vm137, %v485, %v469
  %v518 = vsel %vm137, %v486, %v470
  %v519 = vsel %vm137, %v487, %v471
  %v520 = vsel %vm137, %v488, %v472
  %v521 = vsel %vm137, %v489, %v473
  %v522 = vsel %vm137, %v490, %v474
  %v523 = vsel %vm137, %v491, %v475
  %v524 = vsel %vm137, %v492, %v476
  %v525 = vsel %vm172, -inf, %v493
  %v526 = vsel %vm173, -inf, %v509
  %v527 = vsel %vm172, -inf, %v494
  %v528 = vsel %vm173, -inf, %v510
  %v529 = vsel %vm172, -inf, %v495
  %v530 = vsel %vm173, -inf, %v511
  %v531 = vsel %vm172, -inf, %v496
  %v532 = vsel %vm173, -inf, %v512
  %v533 = vsel %vm172, -inf, %v497
  %v534 = vsel %vm173, -inf, %v513
  %v535 = vsel %vm172, -inf, %v498
  %v536 = vsel %vm173, -inf, %v514
  %v537 = vsel %vm172, -inf, %v499
  %v538 = vsel %vm173, -inf, %v515
  %v539 = vsel %vm172, -inf, %v500
  %v540 = vsel %vm173, -inf, %v516
  %v541 = vsel %vm172, -inf, %v501
  %v542 = vsel %vm173, -inf, %v517
  %v543 = vsel %vm172, -inf, %v502
  %v544 = vsel %vm173, -inf, %v518
  %v545 = vsel %vm172, -inf, %v503
  %v546 = vsel %vm173, -inf, %v519
  %v547 = vsel %vm172, -inf, %v504
  %v548 = vsel %vm173, -inf, %v520
  %v549 = vsel %vm172, -inf, %v505
  %v550 = vsel %vm173, -inf, %v521
  %v551 = vsel %vm172, -inf, %v506
  %v552 = vsel %vm173, -inf, %v522
  %v553 = vsel %vm172, -inf, %v507
  %v554 = vsel %vm173, -inf, %v523
  %v555 = vsel %vm172, -inf, %v508
  %v556 = vsel %vm173, -inf, %v524
  %v557 = vrot.slane %v403, 7
  %v558 = vrot.slane %v433, 7
  %v559 = vrot.slane %v435, 7
  %v560 = vrot.slane %v437, 7
  %v561 = vrot.slane %v439, 7
  %v562 = vrot.slane %v441, 7
  %v563 = vrot.slane %v443, 7
  %v564 = vrot.slane %v445, 7
  %v565 = vrot.slane %v447, 7
  %v566 = vrot.slane %v449, 7
  %v567 = vrot.slane %v451, 7
  %v568 = vrot.slane %v453, 7
  %v569 = vrot.slane %v455, 7
  %v570 = vrot.slane %v457, 7
  %v571 = vrot.slane %v459, 7
  %v572 = vrot.slane %v431, 7
  %v573 = vrot.slane %v404, 7
  %v574 = vrot.slane %v434, 7
  %v575 = vrot.slane %v436, 7
  %v576 = vrot.slane %v438, 7
  %v577 = vrot.slane %v440, 7
  %v578 = vrot.slane %v442, 7
  %v579 = vrot.slane %v444, 7
  %v580 = vrot.slane %v446, 7
  %v581 = vrot.slane %v448, 7
  %v582 = vrot.slane %v450, 7
  %v583 = vrot.slane %v452, 7
  %v584 = vrot.slane %v454, 7
  %v585 = vrot.slane %v456, 7
  %v586 = vrot.slane %v458, 7
  %v587 = vrot.slane %v460, 7
  %v588 = vrot.slane %v432, 7
  %v589 = vsel %vm238, %v557, %v573
  %v590 = vsel %vm238, %v558, %v574
  %v591 = vsel %vm238, %v559, %v575
  %v592 = vsel %vm238, %v560, %v576
  %v593 = vsel %vm238, %v561, %v577
  %v594 = vsel %vm238, %v562, %v578
  %v595 = vsel %vm238, %v563, %v579
  %v596 = vsel %vm238, %v564, %v580
  %v597 = vsel %vm238, %v565, %v581
  %v598 = vsel %vm238, %v566, %v582
  %v599 = vsel %vm238, %v567, %v583
  %v600 = vsel %vm238, %v568, %v584
  %v601 = vsel %vm238, %v569, %v585
  %v602 = vsel %vm238, %v570, %v586
  %v603 = vsel %vm238, %v571, %v587
  %v604 = vsel %vm238, %v572, %v588
  %v605 = vsel %vm238, %v573, %v557
  %v606 = vsel %vm238, %v574, %v558
  %v607 = vsel %vm238, %v575, %v559
  %v608 = vsel %vm238, %v576, %v560
  %v609 = vsel %vm238, %v577, %v561
  %v610 = vsel %vm238, %v578, %v562
  %v611 = vsel %vm238, %v579, %v563
  %v612 = vsel %vm238, %v580, %v564
  %v613 = vsel %vm238, %v581, %v565
  %v614 = vsel %vm238, %v582, %v566
  %v615 = vsel %vm238, %v583, %v567
  %v616 = vsel %vm238, %v584, %v568
  %v617 = vsel %vm238, %v585, %v569
  %v618 = vsel %vm238, %v586, %v570
  %v619 = vsel %vm238, %v587, %v571
  %v620 = vsel %vm238, %v588, %v572
  %v621 = vsel %vm273, -inf, %v605
  %v622 = vsel %vm274, -inf, %v589
  %v623 = vsel %vm273, -inf, %v606
  %v624 = vsel %vm274, -inf, %v590
  %v625 = vsel %vm273, -inf, %v607
  %v626 = vsel %vm274, -inf, %v591
  %v627 = vsel %vm273, -inf, %v608
  %v628 = vsel %vm274, -inf, %v592
  %v629 = vsel %vm273, -inf, %v609
  %v630 = vsel %vm274, -inf, %v593
  %v631 = vsel %vm273, -inf, %v610
  %v632 = vsel %vm274, -inf, %v594
  %v633 = vsel %vm273, -inf, %v611
  %v634 = vsel %vm274, -inf, %v595
  %v635 = vsel %vm273, -inf, %v612
  %v636 = vsel %vm274, -inf, %v596
  %v637 = vsel %vm273, -inf, %v613
  %v638 = vsel %vm274, -inf, %v597
  %v639 = vsel %vm273, -inf, %v614
  %v640 = vsel %vm274, -inf, %v598
  %v641 = vsel %vm273, -inf, %v615
  %v642 = vsel %vm274, -inf, %v599
  %v643 = vsel %vm273, -inf, %v616
  %v644 = vsel %vm274, -inf, %v600
  %v645 = vsel %vm273, -inf, %v617
  %v646 = vsel %vm274, -inf, %v601
  %v647 = vsel %vm273, -inf, %v618
  %v648 = vsel %vm274, -inf, %v602
  %v649 = vsel %vm273, -inf, %v619
  %v650 = vsel %vm274, -inf, %v603
  %v651 = vsel %vm273, -inf, %v620
  %v652 = vsel %vm274, -inf, %v604
  %v653 = vmax.f32 %v525, %v403
  %v654 = vmax.f32 %v526, %v404
  %v655 = vmax.f32 %v527, %v433
  %v656 = vmax.f32 %v528, %v434
  %v657 = vmax.f32 %v529, %v435
  %v658 = vmax.f32 %v530, %v436
  %v659 = vmax.f32 %v531, %v437
  %v660 = vmax.f32 %v532, %v438
  %v661 = vmax.f32 %v533, %v439
  %v662 = vmax.f32 %v534, %v440
  %v663 = vmax.f32 %v535, %v441
  %v664 = vmax.f32 %v536, %v442
  %v665 = vmax.f32 %v537, %v443
  %v666 = vmax.f32 %v538, %v444
  %v667 = vmax.f32 %v539, %v445
  %v668 = vmax.f32 %v540, %v446
  %v669 = vmax.f32 %v541, %v447
  %v670 = vmax.f32 %v542, %v448
  %v671 = vmax.f32 %v543, %v449
  %v672 = vmax.f32 %v544, %v450
  %v673 = vmax.f32 %v545, %v451
  %v674 = vmax.f32 %v546, %v452
  %v675 = vmax.f32 %v547, %v453
  %v676 = vmax.f32 %v548, %v454
  %v677 = vmax.f32 %v549, %v455
  %v678 = vmax.f32 %v550, %v456
  %v679 = vmax.f32 %v551, %v457
  %v680 = vmax.f32 %v552, %v458
  %v681 = vmax.f32 %v553, %v459
  %v682 = vmax.f32 %v554, %v460
  %v683 = vmax.f32 %v555, %v431
  %v684 = vmax.f32 %v556, %v432
  %v685 = vmax.f32 %v653, %v621
  %v686 = vmax.f32 %v654, %v622
  %v687 = vmax.f32 %v655, %v623
  %v688 = vmax.f32 %v656, %v624
  %v689 = vmax.f32 %v657, %v625
  %v690 = vmax.f32 %v658, %v626
  %v691 = vmax.f32 %v659, %v627
  %v692 = vmax.f32 %v660, %v628
  %v693 = vmax.f32 %v661, %v629
  %v694 = vmax.f32 %v662, %v630
  %v695 = vmax.f32 %v663, %v631
  %v696 = vmax.f32 %v664, %v632
  %v697 = vmax.f32 %v665, %v633
  %v698 = vmax.f32 %v666, %v634
  %v699 = vmax.f32 %v667, %v635
  %v700 = vmax.f32 %v668, %v636
  %v701 = vmax.f32 %v669, %v637
  %v702 = vmax.f32 %v670, %v638
  %v703 = vmax.f32 %v671, %v639
  %v704 = vmax.f32 %v672, %v640
  %v705 = vmax.f32 %v673, %v641
  %v706 = vmax.f32 %v674, %v642
  %v707 = vmax.f32 %v675, %v643
  %v708 = vmax.f32 %v676, %v644
  %v709 = vmax.f32 %v677, %v645
  %v710 = vmax.f32 %v678, %v646
  %v711 = vmax.f32 %v679, %v647
  %v712 = vmax.f32 %v680, %v648
  %v713 = vmax.f32 %v681, %v649
  %v714 = vmax.f32 %v682, %v650
  %v715 = vmax.f32 %v683, %v651
  %v716 = vmax.f32 %v684, %v652
  %v717 = vadd.f32 %v685, %v371
  %v718 = vadd.f32 %v686, %v372
  %v719 = vadd.f32 %v687, %v373
  %v720 = vadd.f32 %v688, %v374
  %v721 = vadd.f32 %v689, %v375
  %v722 = vadd.f32 %v690, %v376
  %v723 = vadd.f32 %v691, %v377
  %v724 = vadd.f32 %v692, %v378
  %v725 = vadd.f32 %v693, %v379
  %v726 = vadd.f32 %v694, %v380
  %v727 = vadd.f32 %v695, %v381
  %v728 = vadd.f32 %v696, %v382
  %v729 = vadd.f32 %v697, %v383
  %v730 = vadd.f32 %v698, %v384
  %v731 = vadd.f32 %v699, %v385
  %v732 = vadd.f32 %v700, %v386
  %v733 = vadd.f32 %v701, %v387
  %v734 = vadd.f32 %v702, %v388
  %v735 = vadd.f32 %v703, %v389
  %v736 = vadd.f32 %v704, %v390
  %v737 = vadd.f32 %v705, %v391
  %v738 = vadd.f32 %v706, %v392
  %v739 = vadd.f32 %v707, %v393
  %v740 = vadd.f32 %v708, %v394
  %v741 = vadd.f32 %v709, %v395
  %v742 = vadd.f32 %v710, %v396
  %v743 = vadd.f32 %v711, %v397
  %v744 = vadd.f32 %v712, %v398
  %v745 = vadd.f32 %v713, %v399
  %v746 = vadd.f32 %v714, %v400
  %v747 = vadd.f32 %v715, %v401
  %v748 = vadd.f32 %v716, %v402
  %v749 = vmax.f32 %v719, %v717
  %v750 = vmax.f32 %v720, %v718
  %v751 = vmax.f32 %v721, %v719
  %v752 = vmax.f32 %v722, %v720
  %v753 = vmax.f32 %v723, %v721
  %v754 = vmax.f32 %v724, %v722
  %v755 = vmax.f32 %v725, %v723
  %v756 = vmax.f32 %v726, %v724
  %v757 = vmax.f32 %v727, %v725
  %v758 = vmax.f32 %v728, %v726
  %v759 = vmax.f32 %v729, %v727
  %v760 = vmax.f32 %v730, %v728
  %v761 = vmax.f32 %v731, %v729
  %v762 = vmax.f32 %v732, %v730
  %v763 = vmax.f32 %v733, %v731
  %v764 = vmax.f32 %v734, %v732
  %v765 = vmax.f32 %v735, %v733
  %v766 = vmax.f32 %v736, %v734
  %v767 = vmax.f32 %v737, %v735
  %v768 = vmax.f32 %v738, %v736
  %v769 = vmax.f32 %v739, %v737
  %v770 = vmax.f32 %v740, %v738
  %v771 = vmax.f32 %v741, %v739
  %v772 = vmax.f32 %v742, %v740
  %v773 = vmax.f32 %v743, %v741
  %v774 = vmax.f32 %v744, %v742
  %v775 = vmax.f32 %v745, %v743
  %v776 = vmax.f32 %v746, %v744
  %v777 = vmax.f32 %v747, %v745
  %v778 = vmax.f32 %v748, %v746
  %v779 = vmax.f32 %v751, %v717
  %v780 = vmax.f32 %v752, %v718
  %v781 = vmax.f32 %v753, %v719
  %v782 = vmax.f32 %v754, %v720
  %v783 = vmax.f32 %v755, %v721
  %v784 = vmax.f32 %v756, %v722
  %v785 = vmax.f32 %v757, %v723
  %v786 = vmax.f32 %v758, %v724
  %v787 = vmax.f32 %v759, %v725
  %v788 = vmax.f32 %v760, %v726
  %v789 = vmax.f32 %v761, %v727
  %v790 = vmax.f32 %v762, %v728
  %v791 = vmax.f32 %v763, %v729
  %v792 = vmax.f32 %v764, %v730
  %v793 = vmax.f32 %v765, %v731
  %v794 = vmax.f32 %v766, %v732
  %v795 = vmax.f32 %v767, %v733
  %v796 = vmax.f32 %v768, %v734
  %v797 = vmax.f32 %v769, %v735
  %v798 = vmax.f32 %v770, %v736
  %v799 = vmax.f32 %v771, %v737
  %v800 = vmax.f32 %v772, %v738
  %v801 = vmax.f32 %v773, %v739
  %v802 = vmax.f32 %v774, %v740
  %v803 = vmax.f32 %v775, %v741
  %v804 = vmax.f32 %v776, %v742
  %v805 = vmax.f32 %v777, %v743
  %v806 = vmax.f32 %v778, %v744
  %v807 = vrot.slane %v749, 1
  %v808 = vrot.slane %v779, 1
  %v809 = vrot.slane %v781, 1
  %v810 = vrot.slane %v783, 1
  %v811 = vrot.slane %v785, 1
  %v812 = vrot.slane %v787, 1
  %v813 = vrot.slane %v789, 1
  %v814 = vrot.slane %v791, 1
  %v815 = vrot.slane %v793, 1
  %v816 = vrot.slane %v795, 1
  %v817 = vrot.slane %v797, 1
  %v818 = vrot.slane %v799, 1
  %v819 = vrot.slane %v801, 1
  %v820 = vrot.slane %v803, 1
  %v821 = vrot.slane %v805, 1
  %v822 = vrot.slane %v777, 1
  %v823 = vrot.slane %v750, 1
  %v824 = vrot.slane %v780, 1
  %v825 = vrot.slane %v782, 1
  %v826 = vrot.slane %v784, 1
  %v827 = vrot.slane %v786, 1
  %v828 = vrot.slane %v788, 1
  %v829 = vrot.slane %v790, 1
  %v830 = vrot.slane %v792, 1
  %v831 = vrot.slane %v794, 1
  %v832 = vrot.slane %v796, 1
  %v833 = vrot.slane %v798, 1
  %v834 = vrot.slane %v800, 1
  %v835 = vrot.slane %v802, 1
  %v836 = vrot.slane %v804, 1
  %v837 = vrot.slane %v806, 1
  %v838 = vrot.slane %v778, 1
  %v839 = vsel %vm137, %v807, %v823
  %v840 = vsel %vm137, %v808, %v824
  %v841 = vsel %vm137, %v809, %v825
  %v842 = vsel %vm137, %v810, %v826
  %v843 = vsel %vm137, %v811, %v827
  %v844 = vsel %vm137, %v812, %v828
  %v845 = vsel %vm137, %v813, %v829
  %v846 = vsel %vm137, %v814, %v830
  %v847 = vsel %vm137, %v815, %v831
  %v848 = vsel %vm137, %v816, %v832
  %v849 = vsel %vm137, %v817, %v833
  %v850 = vsel %vm137, %v818, %v834
  %v851 = vsel %vm137, %v819, %v835
  %v852 = vsel %vm137, %v820, %v836
  %v853 = vsel %vm137, %v821, %v837
  %v854 = vsel %vm137, %v822, %v838
  %v855 = vsel %vm137, %v823, %v807
  %v856 = vsel %vm137, %v824, %v808
  %v857 = vsel %vm137, %v825, %v809
  %v858 = vsel %vm137, %v826, %v810
  %v859 = vsel %vm137, %v827, %v811
  %v860 = vsel %vm137, %v828, %v812
  %v861 = vsel %vm137, %v829, %v813
  %v862 = vsel %vm137, %v830, %v814
  %v863 = vsel %vm137, %v831, %v815
  %v864 = vsel %vm137, %v832, %v816
  %v865 = vsel %vm137, %v833, %v817
  %v866 = vsel %vm137, %v834, %v818
  %v867 = vsel %vm137, %v835, %v819
  %v868 = vsel %vm137, %v836, %v820
  %v869 = vsel %vm137, %v837, %v821
  %v870 = vsel %vm137, %v838, %v822
  %v871 = vsel %vm172, -inf, %v839
  %v872 = vsel %vm173, -inf, %v855
  %v873 = vsel %vm172, -inf, %v840
  %v874 = vsel %vm173, -inf, %v856
  %v875 = vsel %vm172, -inf, %v841
  %v876 = vsel %vm173, -inf, %v857
  %v877 = vsel %vm172, -inf, %v842
  %v878 = vsel %vm173, -inf, %v858
  %v879 = vsel %vm172, -inf, %v843
  %v880 = vsel %vm173, -inf, %v859
  %v881 = vsel %vm172, -inf, %v844
  %v882 = vsel %vm173, -inf, %v860
  %v883 = vsel %vm172, -inf, %v845
  %v884 = vsel %vm173, -inf, %v861
  %v885 = vsel %vm172, -inf, %v846
  %v886 = vsel %vm173, -inf, %v862
  %v887 = vsel %vm172, -inf, %v847
  %v888 = vsel %vm173, -inf, %v863
  %v889 = vsel %vm172, -inf, %v848
  %v890 = vsel %vm173, -inf, %v864
  %v891 = vsel %vm172, -inf, %v849
  %v892 = vsel %vm173, -inf, %v865
  %v893 = vsel %vm172, -inf, %v850
  %v894 = vsel %vm173, -inf, %v866
  %v895 = vsel %vm172, -inf, %v851
  %v896 = vsel %vm173, -inf, %v867
  %v897 = vsel %vm172, -inf, %v852
  %v898 = vsel %vm173, -inf, %v868
  %v899 = vsel %vm172, -inf, %v853
  %v900 = vsel %vm173, -inf, %v869
  %v901 = vsel %vm172, -inf, %v854
  %v902 = vsel %vm173, -inf, %v870
  %v903 = vrot.slane %v749, 7
  %v904 = vrot.slane %v779, 7
  %v905 = vrot.slane %v781, 7
  %v906 = vrot.slane %v783, 7
  %v907 = vrot.slane %v785, 7
  %v908 = vrot.slane %v787, 7
  %v909 = vrot.slane %v789, 7
  %v910 = vrot.slane %v791, 7
  %v911 = vrot.slane %v793, 7
  %v912 = vrot.slane %v795, 7
  %v913 = vrot.slane %v797, 7
  %v914 = vrot.slane %v799, 7
  %v915 = vrot.slane %v801, 7
  %v916 = vrot.slane %v803, 7
  %v917 = vrot.slane %v805, 7
  %v918 = vrot.slane %v777, 7
  %v919 = vrot.slane %v750, 7
  %v920 = vrot.slane %v780, 7
  %v921 = vrot.slane %v782, 7
  %v922 = vrot.slane %v784, 7
  %v923 = vrot.slane %v786, 7
  %v924 = vrot.slane %v788, 7
  %v925 = vrot.slane %v790, 7
  %v926 = vrot.slane %v792, 7
  %v927 = vrot.slane %v794, 7
  %v928 = vrot.slane %v796, 7
  %v929 = vrot.slane %v798, 7
  %v930 = vrot.slane %v800, 7
  %v931 = vrot.slane %v802, 7
  %v932 = vrot.slane %v804, 7
  %v933 = vrot.slane %v806, 7
  %v934 = vrot.slane %v778, 7
  %v935 = vsel %vm238, %v903, %v919
  %v936 = vsel %vm238, %v904, %v920
  %v937 = vsel %vm238, %v905, %v921
  %v938 = vsel %vm238, %v906, %v922
  %v939 = vsel %vm238, %v907, %v923
  %v940 = vsel %vm238, %v908, %v924
  %v941 = vsel %vm238, %v909, %v925
  %v942 = vsel %vm238, %v910, %v926
  %v943 = vsel %vm238, %v911, %v927
  %v944 = vsel %vm238, %v912, %v928
  %v945 = vsel %vm238, %v913, %v929
  %v946 = vsel %vm238, %v914, %v930
  %v947 = vsel %vm238, %v915, %v931
  %v948 = vsel %vm238, %v916, %v932
  %v949 = vsel %vm238, %v917, %v933
  %v950 = vsel %vm238, %v918, %v934
  %v951 = vsel %vm238, %v919, %v903
  %v952 = vsel %vm238, %v920, %v904
  %v953 = vsel %vm238, %v921, %v905
  %v954 = vsel %vm238, %v922, %v906
  %v955 = vsel %vm238, %v923, %v907
  %v956 = vsel %vm238, %v924, %v908
  %v957 = vsel %vm238, %v925, %v909
  %v958 = vsel %vm238, %v926, %v910
  %v959 = vsel %vm238, %v927, %v911
  %v960 = vsel %vm238, %v928, %v912
  %v961 = vsel %vm238, %v929, %v913
  %v962 = vsel %vm238, %v930, %v914
  %v963 = vsel %vm238, %v931, %v915
  %v964 = vsel %vm238, %v932, %v916
  %v965 = vsel %vm238, %v933, %v917
  %v966 = vsel %vm238, %v934, %v918
  %v967 = vsel %vm273, -inf, %v951
  %v968 = vsel %vm274, -inf, %v935
  %v969 = vsel %vm273, -inf, %v952
  %v970 = vsel %vm274, -inf, %v936
  %v971 = vsel %vm273, -inf, %v953
  %v972 = vsel %vm274, -inf, %v937
  %v973 = vsel %vm273, -inf, %v954
  %v974 = vsel %vm274, -inf, %v938
  %v975 = vsel %vm273, -inf, %v955
  %v976 = vsel %vm274, -inf, %v939
  %v977 = vsel %vm273, -inf, %v956
  %v978 = vsel %vm274, -inf, %v940
  %v979 = vsel %vm273, -inf, %v957
  %v980 = vsel %vm274, -inf, %v941
  %v981 = vsel %vm273, -inf, %v958
  %v982 = vsel %vm274, -inf, %v942
  %v983 = vsel %vm273, -inf, %v959
  %v984 = vsel %vm274, -inf, %v943
  %v985 = vsel %vm273, -inf, %v960
  %v986 = vsel %vm274, -inf, %v944
  %v987 = vsel %vm273, -inf, %v961
  %v988 = vsel %vm274, -inf, %v945
  %v989 = vsel %vm273, -inf, %v962
  %v990 = vsel %vm274, -inf, %v946
  %v991 = vsel %vm273, -inf, %v963
  %v992 = vsel %vm274, -inf, %v947
  %v993 = vsel %vm273, -inf, %v964
  %v994 = vsel %vm274, -inf, %v948
  %v995 = vsel %vm273, -inf, %v965
  %v996 = vsel %vm274, -inf, %v949
  %v997 = vsel %vm273, -inf, %v966
  %v998 = vsel %vm274, -inf, %v950
  %v999 = vmax.f32 %v871, %v749
  %v1000 = vmax.f32 %v872, %v750
  %v1001 = vmax.f32 %v873, %v779
  %v1002 = vmax.f32 %v874, %v780
  %v1003 = vmax.f32 %v875, %v781
  %v1004 = vmax.f32 %v876, %v782
  %v1005 = vmax.f32 %v877, %v783
  %v1006 = vmax.f32 %v878, %v784
  %v1007 = vmax.f32 %v879, %v785
  %v1008 = vmax.f32 %v880, %v786
  %v1009 = vmax.f32 %v881, %v787
  %v1010 = vmax.f32 %v882, %v788
  %v1011 = vmax.f32 %v883, %v789
  %v1012 = vmax.f32 %v884, %v790
  %v1013 = vmax.f32 %v885, %v791
  %v1014 = vmax.f32 %v886, %v792
  %v1015 = vmax.f32 %v887, %v793
  %v1016 = vmax.f32 %v888, %v794
  %v1017 = vmax.f32 %v889, %v795
  %v1018 = vmax.f32 %v890, %v796
  %v1019 = vmax.f32 %v891, %v797
  %v1020 = vmax.f32 %v892, %v798
  %v1021 = vmax.f32 %v893, %v799
  %v1022 = vmax.f32 %v894, %v800
  %v1023 = vmax.f32 %v895, %v801
  %v1024 = vmax.f32 %v896, %v802
  %v1025 = vmax.f32 %v897, %v803
  %v1026 = vmax.f32 %v898, %v804
  %v1027 = vmax.f32 %v899, %v805
  %v1028 = vmax.f32 %v900, %v806
  %v1029 = vmax.f32 %v901, %v777
  %v1030 = vmax.f32 %v902, %v778
  %v1031 = vmax.f32 %v999, %v967
  %v1032 = vmax.f32 %v1000, %v968
  %v1033 = vmax.f32 %v1001, %v969
  %v1034 = vmax.f32 %v1002, %v970
  %v1035 = vmax.f32 %v1003, %v971
  %v1036 = vmax.f32 %v1004, %v972
  %v1037 = vmax.f32 %v1005, %v973
  %v1038 = vmax.f32 %v1006, %v974
  %v1039 = vmax.f32 %v1007, %v975
  %v1040 = vmax.f32 %v1008, %v976
  %v1041 = vmax.f32 %v1009, %v977
  %v1042 = vmax.f32 %v1010, %v978
  %v1043 = vmax.f32 %v1011, %v979
  %v1044 = vmax.f32 %v1012, %v980
  %v1045 = vmax.f32 %v1013, %v981
  %v1046 = vmax.f32 %v1014, %v982
  %v1047 = vmax.f32 %v1015, %v983
  %v1048 = vmax.f32 %v1016, %v984
  %v1049 = vmax.f32 %v1017, %v985
  %v1050 = vmax.f32 %v1018, %v986
  %v1051 = vmax.f32 %v1019, %v987
  %v1052 = vmax.f32 %v1020, %v988
  %v1053 = vmax.f32 %v1021, %v989
  %v1054 = vmax.f32 %v1022, %v990
  %v1055 = vmax.f32 %v1023, %v991
  %v1056 = vmax.f32 %v1024, %v992
  %v1057 = vmax.f32 %v1025, %v993
  %v1058 = vmax.f32 %v1026, %v994
  %v1059 = vmax.f32 %v1027, %v995
  %v1060 = vmax.f32 %v1028, %v996
  %v1061 = vmax.f32 %v1029, %v997
  %v1062 = vmax.f32 %v1030, %v998
  %v1063 = vadd.f32 %v1031, %v717
  %v1064 = vadd.f32 %v1032, %v718
  %v1065 = vadd.f32 %v1033, %v719
  %v1066 = vadd.f32 %v1034, %v720
  %v1067 = vadd.f32 %v1035, %v721
  %v1068 = vadd.f32 %v1036, %v722
  %v1069 = vadd.f32 %v1037, %v723
  %v1070 = vadd.f32 %v1038, %v724
  %v1071 = vadd.f32 %v1039, %v725
  %v1072 = vadd.f32 %v1040, %v726
  %v1073 = vadd.f32 %v1041, %v727
  %v1074 = vadd.f32 %v1042, %v728
  %v1075 = vadd.f32 %v1043, %v729
  %v1076 = vadd.f32 %v1044, %v730
  %v1077 = vadd.f32 %v1045, %v731
  %v1078 = vadd.f32 %v1046, %v732
  %v1079 = vadd.f32 %v1047, %v733
  %v1080 = vadd.f32 %v1048, %v734
  %v1081 = vadd.f32 %v1049, %v735
  %v1082 = vadd.f32 %v1050, %v736
  %v1083 = vadd.f32 %v1051, %v737
  %v1084 = vadd.f32 %v1052, %v738
  %v1085 = vadd.f32 %v1053, %v739
  %v1086 = vadd.f32 %v1054, %v740
  %v1087 = vadd.f32 %v1055, %v741
  %v1088 = vadd.f32 %v1056, %v742
  %v1089 = vadd.f32 %v1057, %v743
  %v1090 = vadd.f32 %v1058, %v744
  %v1091 = vadd.f32 %v1059, %v745
  %v1092 = vadd.f32 %v1060, %v746
  %v1093 = vadd.f32 %v1061, %v747
  %v1094 = vadd.f32 %v1062, %v748
  %v1095 = vmax.f32 %v1065, %v1063
  %v1096 = vmax.f32 %v1066, %v1064
  %v1097 = vmax.f32 %v1067, %v1065
  %v1098 = vmax.f32 %v1068, %v1066
  %v1099 = vmax.f32 %v1069, %v1067
  %v1100 = vmax.f32 %v1070, %v1068
  %v1101 = vmax.f32 %v1071, %v1069
  %v1102 = vmax.f32 %v1072, %v1070
  %v1103 = vmax.f32 %v1073, %v1071
  %v1104 = vmax.f32 %v1074, %v1072
  %v1105 = vmax.f32 %v1075, %v1073
  %v1106 = vmax.f32 %v1076, %v1074
  %v1107 = vmax.f32 %v1077, %v1075
  %v1108 = vmax.f32 %v1078, %v1076
  %v1109 = vmax.f32 %v1079, %v1077
  %v1110 = vmax.f32 %v1080, %v1078
  %v1111 = vmax.f32 %v1081, %v1079
  %v1112 = vmax.f32 %v1082, %v1080
  %v1113 = vmax.f32 %v1083, %v1081
  %v1114 = vmax.f32 %v1084, %v1082
  %v1115 = vmax.f32 %v1085, %v1083
  %v1116 = vmax.f32 %v1086, %v1084
  %v1117 = vmax.f32 %v1087, %v1085
  %v1118 = vmax.f32 %v1088, %v1086
  %v1119 = vmax.f32 %v1089, %v1087
  %v1120 = vmax.f32 %v1090, %v1088
  %v1121 = vmax.f32 %v1091, %v1089
  %v1122 = vmax.f32 %v1092, %v1090
  %v1123 = vmax.f32 %v1093, %v1091
  %v1124 = vmax.f32 %v1094, %v1092
  %v1125 = vmax.f32 %v1097, %v1063
  %v1126 = vmax.f32 %v1098, %v1064
  %v1127 = vmax.f32 %v1099, %v1065
  %v1128 = vmax.f32 %v1100, %v1066
  %v1129 = vmax.f32 %v1101, %v1067
  %v1130 = vmax.f32 %v1102, %v1068
  %v1131 = vmax.f32 %v1103, %v1069
  %v1132 = vmax.f32 %v1104, %v1070
  %v1133 = vmax.f32 %v1105, %v1071
  %v1134 = vmax.f32 %v1106, %v1072
  %v1135 = vmax.f32 %v1107, %v1073
  %v1136 = vmax.f32 %v1108, %v1074
  %v1137 = vmax.f32 %v1109, %v1075
  %v1138 = vmax.f32 %v1110, %v1076
  %v1139 = vmax.f32 %v1111, %v1077
  %v1140 = vmax.f32 %v1112, %v1078
  %v1141 = vmax.f32 %v1113, %v1079
  %v1142 = vmax.f32 %v1114, %v1080
  %v1143 = vmax.f32 %v1115, %v1081
  %v1144 = vmax.f32 %v1116, %v1082
  %v1145 = vmax.f32 %v1117, %v1083
  %v1146 = vmax.f32 %v1118, %v1084
  %v1147 = vmax.f32 %v1119, %v1085
  %v1148 = vmax.f32 %v1120, %v1086
  %v1149 = vmax.f32 %v1121, %v1087
  %v1150 = vmax.f32 %v1122, %v1088
  %v1151 = vmax.f32 %v1123, %v1089
  %v1152 = vmax.f32 %v1124, %v1090
  %v1153 = vrot.slane %v1095, 1
  %v1154 = vrot.slane %v1125, 1
  %v1155 = vrot.slane %v1127, 1
  %v1156 = vrot.slane %v1129, 1
  %v1157 = vrot.slane %v1131, 1
  %v1158 = vrot.slane %v1133, 1
  %v1159 = vrot.slane %v1135, 1
  %v1160 = vrot.slane %v1137, 1
  %v1161 = vrot.slane %v1139, 1
  %v1162 = vrot.slane %v1141, 1
  %v1163 = vrot.slane %v1143, 1
  %v1164 = vrot.slane %v1145, 1
  %v1165 = vrot.slane %v1147, 1
  %v1166 = vrot.slane %v1149, 1
  %v1167 = vrot.slane %v1151, 1
  %v1168 = vrot.slane %v1123, 1
  %v1169 = vrot.slane %v1096, 1
  %v1170 = vrot.slane %v1126, 1
  %v1171 = vrot.slane %v1128, 1
  %v1172 = vrot.slane %v1130, 1
  %v1173 = vrot.slane %v1132, 1
  %v1174 = vrot.slane %v1134, 1
  %v1175 = vrot.slane %v1136, 1
  %v1176 = vrot.slane %v1138, 1
  %v1177 = vrot.slane %v1140, 1
  %v1178 = vrot.slane %v1142, 1
  %v1179 = vrot.slane %v1144, 1
  %v1180 = vrot.slane %v1146, 1
  %v1181 = vrot.slane %v1148, 1
  %v1182 = vrot.slane %v1150, 1
  %v1183 = vrot.slane %v1152, 1
  %v1184 = vrot.slane %v1124, 1
  %v1185 = vsel %vm137, %v1153, %v1169
  %v1186 = vsel %vm137, %v1154, %v1170
  %v1187 = vsel %vm137, %v1155, %v1171
  %v1188 = vsel %vm137, %v1156, %v1172
  %v1189 = vsel %vm137, %v1157, %v1173
  %v1190 = vsel %vm137, %v1158, %v1174
  %v1191 = vsel %vm137, %v1159, %v1175
  %v1192 = vsel %vm137, %v1160, %v1176
  %v1193 = vsel %vm137, %v1161, %v1177
  %v1194 = vsel %vm137, %v1162, %v1178
  %v1195 = vsel %vm137, %v1163, %v1179
  %v1196 = vsel %vm137, %v1164, %v1180
  %v1197 = vsel %vm137, %v1165, %v1181
  %v1198 = vsel %vm137, %v1166, %v1182
  %v1199 = vsel %vm137, %v1167, %v1183
  %v1200 = vsel %vm137, %v1168, %v1184
  %v1201 = vsel %vm137, %v1169, %v1153
  %v1202 = vsel %vm137, %v1170, %v1154
  %v1203 = vsel %vm137, %v1171, %v1155
  %v1204 = vsel %vm137, %v1172, %v1156
  %v1205 = vsel %vm137, %v1173, %v1157
  %v1206 = vsel %vm137, %v1174, %v1158
  %v1207 = vsel %vm137, %v1175, %v1159
  %v1208 = vsel %vm137, %v1176, %v1160
  %v1209 = vsel %vm137, %v1177, %v1161
  %v1210 = vsel %vm137, %v1178, %v1162
  %v1211 = vsel %vm137, %v1179, %v1163
  %v1212 = vsel %vm137, %v1180, %v1164
  %v1213 = vsel %vm137, %v1181, %v1165
  %v1214 = vsel %vm137, %v1182, %v1166
  %v1215 = vsel %vm137, %v1183, %v1167
  %v1216 = vsel %vm137, %v1184, %v1168
  %v1217 = vsel %vm172, -inf, %v1185
  %v1218 = vsel %vm173, -inf, %v1201
  %v1219 = vsel %vm172, -inf, %v1186
  %v1220 = vsel %vm173, -inf, %v1202
  %v1221 = vsel %vm172, -inf, %v1187
  %v1222 = vsel %vm173, -inf, %v1203
  %v1223 = vsel %vm172, -inf, %v1188
  %v1224 = vsel %vm173, -inf, %v1204
  %v1225 = vsel %vm172, -inf, %v1189
  %v1226 = vsel %vm173, -inf, %v1205
  %v1227 = vsel %vm172, -inf, %v1190
  %v1228 = vsel %vm173, -inf, %v1206
  %v1229 = vsel %vm172, -inf, %v1191
  %v1230 = vsel %vm173, -inf, %v1207
  %v1231 = vsel %vm172, -inf, %v1192
  %v1232 = vsel %vm173, -inf, %v1208
  %v1233 = vsel %vm172, -inf, %v1193
  %v1234 = vsel %vm173, -inf, %v1209
  %v1235 = vsel %vm172, -inf, %v1194
  %v1236 = vsel %vm173, -inf, %v1210
  %v1237 = vsel %vm172, -inf, %v1195
  %v1238 = vsel %vm173, -inf, %v1211
  %v1239 = vsel %vm172, -inf, %v1196
  %v1240 = vsel %vm173, -inf, %v1212
  %v1241 = vsel %vm172, -inf, %v1197
  %v1242 = vsel %vm173, -inf, %v1213
  %v1243 = vsel %vm172, -inf, %v1198
  %v1244 = vsel %vm173, -inf, %v1214
  %v1245 = vsel %vm172, -inf, %v1199
  %v1246 = vsel %vm173, -inf, %v1215
  %v1247 = vsel %vm172, -inf, %v1200
  %v1248 = vsel %vm173, -inf, %v1216
  %v1249 = vrot.slane %v1095, 7
  %v1250 = vrot.slane %v1125, 7
  %v1251 = vrot.slane %v1127, 7
  %v1252 = vrot.slane %v1129, 7
  %v1253 = vrot.slane %v1131, 7
  %v1254 = vrot.slane %v1133, 7
  %v1255 = vrot.slane %v1135, 7
  %v1256 = vrot.slane %v1137, 7
  %v1257 = vrot.slane %v1139, 7
  %v1258 = vrot.slane %v1141, 7
  %v1259 = vrot.slane %v1143, 7
  %v1260 = vrot.slane %v1145, 7
  %v1261 = vrot.slane %v1147, 7
  %v1262 = vrot.slane %v1149, 7
  %v1263 = vrot.slane %v1151, 7
  %v1264 = vrot.slane %v1123, 7
  %v1265 = vrot.slane %v1096, 7
  %v1266 = vrot.slane %v1126, 7
  %v1267 = vrot.slane %v1128, 7
  %v1268 = vrot.slane %v1130, 7
  %v1269 = vrot.slane %v1132, 7
  %v1270 = vrot.slane %v1134, 7
  %v1271 = vrot.slane %v1136, 7
  %v1272 = vrot.slane %v1138, 7
  %v1273 = vrot.slane %v1140, 7
  %v1274 = vrot.slane %v1142, 7
  %v1275 = vrot.slane %v1144, 7
  %v1276 = vrot.slane %v1146, 7
  %v1277 = vrot.slane %v1148, 7
  %v1278 = vrot.slane %v1150, 7
  %v1279 = vrot.slane %v1152, 7
  %v1280 = vrot.slane %v1124, 7
  %v1281 = vsel %vm238, %v1249, %v1265
  %v1282 = vsel %vm238, %v1250, %v1266
  %v1283 = vsel %vm238, %v1251, %v1267
  %v1284 = vsel %vm238, %v1252, %v1268
  %v1285 = vsel %vm238, %v1253, %v1269
  %v1286 = vsel %vm238, %v1254, %v1270
  %v1287 = vsel %vm238, %v1255, %v1271
  %v1288 = vsel %vm238, %v1256, %v1272
  %v1289 = vsel %vm238, %v1257, %v1273
  %v1290 = vsel %vm238, %v1258, %v1274
  %v1291 = vsel %vm238, %v1259, %v1275
  %v1292 = vsel %vm238, %v1260, %v1276
  %v1293 = vsel %vm238, %v1261, %v1277
  %v1294 = vsel %vm238, %v1262, %v1278
  %v1295 = vsel %vm238, %v1263, %v1279
  %v1296 = vsel %vm238, %v1264, %v1280
  %v1297 = vsel %vm238, %v1265, %v1249
  %v1298 = vsel %vm238, %v1266, %v1250
  %v1299 = vsel %vm238, %v1267, %v1251
  %v1300 = vsel %vm238, %v1268, %v1252
  %v1301 = vsel %vm238, %v1269, %v1253
  %v1302 = vsel %vm238, %v1270, %v1254
  %v1303 = vsel %vm238, %v1271, %v1255
  %v1304 = vsel %vm238, %v1272, %v1256
  %v1305 = vsel %vm238, %v1273, %v1257
  %v1306 = vsel %vm238, %v1274, %v1258
  %v1307 = vsel %vm238, %v1275, %v1259
  %v1308 = vsel %vm238, %v1276, %v1260
  %v1309 = vsel %vm238, %v1277, %v1261
  %v1310 = vsel %vm238, %v1278, %v1262
  %v1311 = vsel %vm238, %v1279, %v1263
  %v1312 = vsel %vm238, %v1280, %v1264
  %v1313 = vsel %vm273, -inf, %v1297
  %v1314 = vsel %vm274, -inf, %v1281
  %v1315 = vsel %vm273, -inf, %v1298
  %v1316 = vsel %vm274, -inf, %v1282
  %v1317 = vsel %vm273, -inf, %v1299
  %v1318 = vsel %vm274, -inf, %v1283
  %v1319 = vsel %vm273, -inf, %v1300
  %v1320 = vsel %vm274, -inf, %v1284
  %v1321 = vsel %vm273, -inf, %v1301
  %v1322 = vsel %vm274, -inf, %v1285
  %v1323 = vsel %vm273, -inf, %v1302
  %v1324 = vsel %vm274, -inf, %v1286
  %v1325 = vsel %vm273, -inf, %v1303
  %v1326 = vsel %vm274, -inf, %v1287
  %v1327 = vsel %vm273, -inf, %v1304
  %v1328 = vsel %vm274, -inf, %v1288
  %v1329 = vsel %vm273, -inf, %v1305
  %v1330 = vsel %vm274, -inf, %v1289
  %v1331 = vsel %vm273, -inf, %v1306
  %v1332 = vsel %vm274, -inf, %v1290
  %v1333 = vsel %vm273, -inf, %v1307
  %v1334 = vsel %vm274, -inf, %v1291
  %v1335 = vsel %vm273, -inf, %v1308
  %v1336 = vsel %vm274, -inf, %v1292
  %v1337 = vsel %vm273, -inf, %v1309
  %v1338 = vsel %vm274, -inf, %v1293
  %v1339 = vsel %vm273, -inf, %v1310
  %v1340 = vsel %vm274, -inf, %v1294
  %v1341 = vsel %vm273, -inf, %v1311
  %v1342 = vsel %vm274, -inf, %v1295
  %v1343 = vsel %vm273, -inf, %v1312
  %v1344 = vsel %vm274, -inf, %v1296
  %v1345 = vmax.f32 %v1217, %v1095
  %v1346 = vmax.f32 %v1218, %v1096
  %v1347 = vmax.f32 %v1219, %v1125
  %v1348 = vmax.f32 %v1220, %v1126
  %v1349 = vmax.f32 %v1221, %v1127
  %v1350 = vmax.f32 %v1222, %v1128
  %v1351 = vmax.f32 %v1223, %v1129
  %v1352 = vmax.f32 %v1224, %v1130
  %v1353 = vmax.f32 %v1225, %v1131
  %v1354 = vmax.f32 %v1226, %v1132
  %v1355 = vmax.f32 %v1227, %v1133
  %v1356 = vmax.f32 %v1228, %v1134
  %v1357 = vmax.f32 %v1229, %v1135
  %v1358 = vmax.f32 %v1230, %v1136
  %v1359 = vmax.f32 %v1231, %v1137
  %v1360 = vmax.f32 %v1232, %v1138
  %v1361 = vmax.f32 %v1233, %v1139
  %v1362 = vmax.f32 %v1234, %v1140
  %v1363 = vmax.f32 %v1235, %v1141
  %v1364 = vmax.f32 %v1236, %v1142
  %v1365 = vmax.f32 %v1237, %v1143
  %v1366 = vmax.f32 %v1238, %v1144
  %v1367 = vmax.f32 %v1239, %v1145
  %v1368 = vmax.f32 %v1240, %v1146
  %v1369 = vmax.f32 %v1241, %v1147
  %v1370 = vmax.f32 %v1242, %v1148
  %v1371 = vmax.f32 %v1243, %v1149
  %v1372 = vmax.f32 %v1244, %v1150
  %v1373 = vmax.f32 %v1245, %v1151
  %v1374 = vmax.f32 %v1246, %v1152
  %v1375 = vmax.f32 %v1247, %v1123
  %v1376 = vmax.f32 %v1248, %v1124
  %v1377 = vmax.f32 %v1345, %v1313
  %v1378 = vmax.f32 %v1346, %v1314
  %v1379 = vmax.f32 %v1347, %v1315
  %v1380 = vmax.f32 %v1348, %v1316
  %v1381 = vmax.f32 %v1349, %v1317
  %v1382 = vmax.f32 %v1350, %v1318
  %v1383 = vmax.f32 %v1351, %v1319
  %v1384 = vmax.f32 %v1352, %v1320
  %v1385 = vmax.f32 %v1353, %v1321
  %v1386 = vmax.f32 %v1354, %v1322
  %v1387 = vmax.f32 %v1355, %v1323
  %v1388 = vmax.f32 %v1356, %v1324
  %v1389 = vmax.f32 %v1357, %v1325
  %v1390 = vmax.f32 %v1358, %v1326
  %v1391 = vmax.f32 %v1359, %v1327
  %v1392 = vmax.f32 %v1360, %v1328
  %v1393 = vmax.f32 %v1361, %v1329
  %v1394 = vmax.f32 %v1362, %v1330
  %v1395 = vmax.f32 %v1363, %v1331
  %v1396 = vmax.f32 %v1364, %v1332
  %v1397 = vmax.f32 %v1365, %v1333
  %v1398 = vmax.f32 %v1366, %v1334
  %v1399 = vmax.f32 %v1367, %v1335
  %v1400 = vmax.f32 %v1368, %v1336
  %v1401 = vmax.f32 %v1369, %v1337
  %v1402 = vmax.f32 %v1370, %v1338
  %v1403 = vmax.f32 %v1371, %v1339
  %v1404 = vmax.f32 %v1372, %v1340
  %v1405 = vmax.f32 %v1373, %v1341
  %v1406 = vmax.f32 %v1374, %v1342
  %v1407 = vmax.f32 %v1375, %v1343
  %v1408 = vmax.f32 %v1376, %v1344
  %v1409 = vadd.f32 %v1377, %v1063
  %v1410 = vadd.f32 %v1378, %v1064
  %v1411 = vadd.f32 %v1379, %v1065
  %v1412 = vadd.f32 %v1380, %v1066
  %v1413 = vadd.f32 %v1381, %v1067
  %v1414 = vadd.f32 %v1382, %v1068
  %v1415 = vadd.f32 %v1383, %v1069
  %v1416 = vadd.f32 %v1384, %v1070
  %v1417 = vadd.f32 %v1385, %v1071
  %v1418 = vadd.f32 %v1386, %v1072
  %v1419 = vadd.f32 %v1387, %v1073
  %v1420 = vadd.f32 %v1388, %v1074
  %v1421 = vadd.f32 %v1389, %v1075
  %v1422 = vadd.f32 %v1390, %v1076
  %v1423 = vadd.f32 %v1391, %v1077
  %v1424 = vadd.f32 %v1392, %v1078
  %v1425 = vadd.f32 %v1393, %v1079
  %v1426 = vadd.f32 %v1394, %v1080
  %v1427 = vadd.f32 %v1395, %v1081
  %v1428 = vadd.f32 %v1396, %v1082
  %v1429 = vadd.f32 %v1397, %v1083
  %v1430 = vadd.f32 %v1398, %v1084
  %v1431 = vadd.f32 %v1399, %v1085
  %v1432 = vadd.f32 %v1400, %v1086
  %v1433 = vadd.f32 %v1401, %v1087
  %v1434 = vadd.f32 %v1402, %v1088
  %v1435 = vadd.f32 %v1403, %v1089
  %v1436 = vadd.f32 %v1404, %v1090
  %v1437 = vadd.f32 %v1405, %v1091
  %v1438 = vadd.f32 %v1406, %v1092
  %v1439 = vadd.f32 %v1407, %v1093
  %v1440 = vadd.f32 %v1408, %v1094
  %v1441 = vmax.f32 %v1411, %v1409
  %v1442 = vmax.f32 %v1412, %v1410
  %v1443 = vmax.f32 %v1413, %v1411
  %v1444 = vmax.f32 %v1414, %v1412
  %v1445 = vmax.f32 %v1415, %v1413
  %v1446 = vmax.f32 %v1416, %v1414
  %v1447 = vmax.f32 %v1417, %v1415
  %v1448 = vmax.f32 %v1418, %v1416
  %v1449 = vmax.f32 %v1419, %v1417
  %v1450 = vmax.f32 %v1420, %v1418
  %v1451 = vmax.f32 %v1421, %v1419
  %v1452 = vmax.f32 %v1422, %v1420
  %v1453 = vmax.f32 %v1423, %v1421
  %v1454 = vmax.f32 %v1424, %v1422
  %v1455 = vmax.f32 %v1425, %v1423
  %v1456 = vmax.f32 %v1426, %v1424
  %v1457 = vmax.f32 %v1427, %v1425
  %v1458 = vmax.f32 %v1428, %v1426
  %v1459 = vmax.f32 %v1429, %v1427
  %v1460 = vmax.f32 %v1430, %v1428
  %v1461 = vmax.f32 %v1431, %v1429
  %v1462 = vmax.f32 %v1432, %v1430
  %v1463 = vmax.f32 %v1433, %v1431
  %v1464 = vmax.f32 %v1434, %v1432
  %v1465 = vmax.f32 %v1435, %v1433
  %v1466 = vmax.f32 %v1436, %v1434
  %v1467 = vmax.f32 %v1437, %v1435
  %v1468 = vmax.f32 %v1438, %v1436
  %v1469 = vmax.f32 %v1439, %v1437
  %v1470 = vmax.f32 %v1440, %v1438
  %v1471 = vmax.f32 %v1443, %v1409
  %v1472 = vmax.f32 %v1444, %v1410
  %v1473 = vmax.f32 %v1445, %v1411
  %v1474 = vmax.f32 %v1446, %v1412
  %v1475 = vmax.f32 %v1447, %v1413
  %v1476 = vmax.f32 %v1448, %v1414
  %v1477 = vmax.f32 %v1449, %v1415
  %v1478 = vmax.f32 %v1450, %v1416
  %v1479 = vmax.f32 %v1451, %v1417
  %v1480 = vmax.f32 %v1452, %v1418
  %v1481 = vmax.f32 %v1453, %v1419
  %v1482 = vmax.f32 %v1454, %v1420
  %v1483 = vmax.f32 %v1455, %v1421
  %v1484 = vmax.f32 %v1456, %v1422
  %v1485 = vmax.f32 %v1457, %v1423
  %v1486 = vmax.f32 %v1458, %v1424
  %v1487 = vmax.f32 %v1459, %v1425
  %v1488 = vmax.f32 %v1460, %v1426
  %v1489 = vmax.f32 %v1461, %v1427
  %v1490 = vmax.f32 %v1462, %v1428
  %v1491 = vmax.f32 %v1463, %v1429
  %v1492 = vmax.f32 %v1464, %v1430
  %v1493 = vmax.f32 %v1465, %v1431
  %v1494 = vmax.f32 %v1466, %v1432
  %v1495 = vmax.f32 %v1467, %v1433
  %v1496 = vmax.f32 %v1468, %v1434
  %v1497 = vmax.f32 %v1469, %v1435
  %v1498 = vmax.f32 %v1470, %v1436
  %v1499 = vrot.slane %v1441, 1
  %v1500 = vrot.slane %v1471, 1
  %v1501 = vrot.slane %v1473, 1
  %v1502 = vrot.slane %v1475, 1
  %v1503 = vrot.slane %v1477, 1
  %v1504 = vrot.slane %v1479, 1
  %v1505 = vrot.slane %v1481, 1
  %v1506 = vrot.slane %v1483, 1
  %v1507 = vrot.slane %v1485, 1
  %v1508 = vrot.slane %v1487, 1
  %v1509 = vrot.slane %v1489, 1
  %v1510 = vrot.slane %v1491, 1
  %v1511 = vrot.slane %v1493, 1
  %v1512 = vrot.slane %v1495, 1
  %v1513 = vrot.slane %v1497, 1
  %v1514 = vrot.slane %v1469, 1
  %v1515 = vrot.slane %v1442, 1
  %v1516 = vrot.slane %v1472, 1
  %v1517 = vrot.slane %v1474, 1
  %v1518 = vrot.slane %v1476, 1
  %v1519 = vrot.slane %v1478, 1
  %v1520 = vrot.slane %v1480, 1
  %v1521 = vrot.slane %v1482, 1
  %v1522 = vrot.slane %v1484, 1
  %v1523 = vrot.slane %v1486, 1
  %v1524 = vrot.slane %v1488, 1
  %v1525 = vrot.slane %v1490, 1
  %v1526 = vrot.slane %v1492, 1
  %v1527 = vrot.slane %v1494, 1
  %v1528 = vrot.slane %v1496, 1
  %v1529 = vrot.slane %v1498, 1
  %v1530 = vrot.slane %v1470, 1
  %v1531 = vsel %vm137, %v1499, %v1515
  %v1532 = vsel %vm137, %v1500, %v1516
  %v1533 = vsel %vm137, %v1501, %v1517
  %v1534 = vsel %vm137, %v1502, %v1518
  %v1535 = vsel %vm137, %v1503, %v1519
  %v1536 = vsel %vm137, %v1504, %v1520
  %v1537 = vsel %vm137, %v1505, %v1521
  %v1538 = vsel %vm137, %v1506, %v1522
  %v1539 = vsel %vm137, %v1507, %v1523
  %v1540 = vsel %vm137, %v1508, %v1524
  %v1541 = vsel %vm137, %v1509, %v1525
  %v1542 = vsel %vm137, %v1510, %v1526
  %v1543 = vsel %vm137, %v1511, %v1527
  %v1544 = vsel %vm137, %v1512, %v1528
  %v1545 = vsel %vm137, %v1513, %v1529
  %v1546 = vsel %vm137, %v1514, %v1530
  %v1547 = vsel %vm137, %v1515, %v1499
  %v1548 = vsel %vm137, %v1516, %v1500
  %v1549 = vsel %vm137, %v1517, %v1501
  %v1550 = vsel %vm137, %v1518, %v1502
  %v1551 = vsel %vm137, %v1519, %v1503
  %v1552 = vsel %vm137, %v1520, %v1504
  %v1553 = vsel %vm137, %v1521, %v1505
  %v1554 = vsel %vm137, %v1522, %v1506
  %v1555 = vsel %vm137, %v1523, %v1507
  %v1556 = vsel %vm137, %v1524, %v1508
  %v1557 = vsel %vm137, %v1525, %v1509
  %v1558 = vsel %vm137, %v1526, %v1510
  %v1559 = vsel %vm137, %v1527, %v1511
  %v1560 = vsel %vm137, %v1528, %v1512
  %v1561 = vsel %vm137, %v1529, %v1513
  %v1562 = vsel %vm137, %v1530, %v1514
  %v1563 = vsel %vm172, -inf, %v1531
  %v1564 = vsel %vm173, -inf, %v1547
  %v1565 = vsel %vm172, -inf, %v1532
  %v1566 = vsel %vm173, -inf, %v1548
  %v1567 = vsel %vm172, -inf, %v1533
  %v1568 = vsel %vm173, -inf, %v1549
  %v1569 = vsel %vm172, -inf, %v1534
  %v1570 = vsel %vm173, -inf, %v1550
  %v1571 = vsel %vm172, -inf, %v1535
  %v1572 = vsel %vm173, -inf, %v1551
  %v1573 = vsel %vm172, -inf, %v1536
  %v1574 = vsel %vm173, -inf, %v1552
  %v1575 = vsel %vm172, -inf, %v1537
  %v1576 = vsel %vm173, -inf, %v1553
  %v1577 = vsel %vm172, -inf, %v1538
  %v1578 = vsel %vm173, -inf, %v1554
  %v1579 = vsel %vm172, -inf, %v1539
  %v1580 = vsel %vm173, -inf, %v1555
  %v1581 = vsel %vm172, -inf, %v1540
  %v1582 = vsel %vm173, -inf, %v1556
  %v1583 = vsel %vm172, -inf, %v1541
  %v1584 = vsel %vm173, -inf, %v1557
  %v1585 = vsel %vm172, -inf, %v1542
  %v1586 = vsel %vm173, -inf, %v1558
  %v1587 = vsel %vm172, -inf, %v1543
  %v1588 = vsel %vm173, -inf, %v1559
  %v1589 = vsel %vm172, -inf, %v1544
  %v1590 = vsel %vm173, -inf, %v1560
  %v1591 = vsel %vm172, -inf, %v1545
  %v1592 = vsel %vm173, -inf, %v1561
  %v1593 = vsel %vm172, -inf, %v1546
  %v1594 = vsel %vm173, -inf, %v1562
  %v1595 = vrot.slane %v1441, 7
  %v1596 = vrot.slane %v1471, 7
  %v1597 = vrot.slane %v1473, 7
  %v1598 = vrot.slane %v1475, 7
  %v1599 = vrot.slane %v1477, 7
  %v1600 = vrot.slane %v1479, 7
  %v1601 = vrot.slane %v1481, 7
  %v1602 = vrot.slane %v1483, 7
  %v1603 = vrot.slane %v1485, 7
  %v1604 = vrot.slane %v1487, 7
  %v1605 = vrot.slane %v1489, 7
  %v1606 = vrot.slane %v1491, 7
  %v1607 = vrot.slane %v1493, 7
  %v1608 = vrot.slane %v1495, 7
  %v1609 = vrot.slane %v1497, 7
  %v1610 = vrot.slane %v1469, 7
  %v1611 = vrot.slane %v1442, 7
  %v1612 = vrot.slane %v1472, 7
  %v1613 = vrot.slane %v1474, 7
  %v1614 = vrot.slane %v1476, 7
  %v1615 = vrot.slane %v1478, 7
  %v1616 = vrot.slane %v1480, 7
  %v1617 = vrot.slane %v1482, 7
  %v1618 = vrot.slane %v1484, 7
  %v1619 = vrot.slane %v1486, 7
  %v1620 = vrot.slane %v1488, 7
  %v1621 = vrot.slane %v1490, 7
  %v1622 = vrot.slane %v1492, 7
  %v1623 = vrot.slane %v1494, 7
  %v1624 = vrot.slane %v1496, 7
  %v1625 = vrot.slane %v1498, 7
  %v1626 = vrot.slane %v1470, 7
  %v1627 = vsel %vm238, %v1595, %v1611
  %v1628 = vsel %vm238, %v1596, %v1612
  %v1629 = vsel %vm238, %v1597, %v1613
  %v1630 = vsel %vm238, %v1598, %v1614
  %v1631 = vsel %vm238, %v1599, %v1615
  %v1632 = vsel %vm238, %v1600, %v1616
  %v1633 = vsel %vm238, %v1601, %v1617
  %v1634 = vsel %vm238, %v1602, %v1618
  %v1635 = vsel %vm238, %v1603, %v1619
  %v1636 = vsel %vm238, %v1604, %v1620
  %v1637 = vsel %vm238, %v1605, %v1621
  %v1638 = vsel %vm238, %v1606, %v1622
  %v1639 = vsel %vm238, %v1607, %v1623
  %v1640 = vsel %vm238, %v1608, %v1624
  %v1641 = vsel %vm238, %v1609, %v1625
  %v1642 = vsel %vm238, %v1610, %v1626
  %v1643 = vsel %vm238, %v1611, %v1595
  %v1644 = vsel %vm238, %v1612, %v1596
  %v1645 = vsel %vm238, %v1613, %v1597
  %v1646 = vsel %vm238, %v1614, %v1598
  %v1647 = vsel %vm238, %v1615, %v1599
  %v1648 = vsel %vm238, %v1616, %v1600
  %v1649 = vsel %vm238, %v1617, %v1601
  %v1650 = vsel %vm238, %v1618, %v1602
  %v1651 = vsel %vm238, %v1619, %v1603
  %v1652 = vsel %vm238, %v1620, %v1604
  %v1653 = vsel %vm238, %v1621, %v1605
  %v1654 = vsel %vm238, %v1622, %v1606
  %v1655 = vsel %vm238, %v1623, %v1607
  %v1656 = vsel %vm238, %v1624, %v1608
  %v1657 = vsel %vm238, %v1625, %v1609
  %v1658 = vsel %vm238, %v1626, %v1610
  %v1659 = vsel %vm273, -inf, %v1643
  %v1660 = vsel %vm274, -inf, %v1627
  %v1661 = vsel %vm273, -inf, %v1644
  %v1662 = vsel %vm274, -inf, %v1628
  %v1663 = vsel %vm273, -inf, %v1645
  %v1664 = vsel %vm274, -inf, %v1629
  %v1665 = vsel %vm273, -inf, %v1646
  %v1666 = vsel %vm274, -inf, %v1630
  %v1667 = vsel %vm273, -inf, %v1647
  %v1668 = vsel %vm274, -inf, %v1631
  %v1669 = vsel %vm273, -inf, %v1648
  %v1670 = vsel %vm274, -inf, %v1632
  %v1671 = vsel %vm273, -inf, %v1649
  %v1672 = vsel %vm274, -inf, %v1633
  %v1673 = vsel %vm273, -inf, %v1650
  %v1674 = vsel %vm274, -inf, %v1634
  %v1675 = vsel %vm273, -inf, %v1651
  %v1676 = vsel %vm274, -inf, %v1635
  %v1677 = vsel %vm273, -inf, %v1652
  %v1678 = vsel %vm274, -inf, %v1636
  %v1679 = vsel %vm273, -inf, %v1653
  %v1680 = vsel %vm274, -inf, %v1637
  %v1681 = vsel %vm273, -inf, %v1654
  %v1682 = vsel %vm274, -inf, %v1638
  %v1683 = vsel %vm273, -inf, %v1655
  %v1684 = vsel %vm274, -inf, %v1639
  %v1685 = vsel %vm273, -inf, %v1656
  %v1686 = vsel %vm274, -inf, %v1640
  %v1687 = vsel %vm273, -inf, %v1657
  %v1688 = vsel %vm274, -inf, %v1641
  %v1689 = vsel %vm273, -inf, %v1658
  %v1690 = vsel %vm274, -inf, %v1642
  %v1691 = vmax.f32 %v1563, %v1441
  %v1692 = vmax.f32 %v1564, %v1442
  %v1693 = vmax.f32 %v1565, %v1471
  %v1694 = vmax.f32 %v1566, %v1472
  %v1695 = vmax.f32 %v1567, %v1473
  %v1696 = vmax.f32 %v1568, %v1474
  %v1697 = vmax.f32 %v1569, %v1475
  %v1698 = vmax.f32 %v1570, %v1476
  %v1699 = vmax.f32 %v1571, %v1477
  %v1700 = vmax.f32 %v1572, %v1478
  %v1701 = vmax.f32 %v1573, %v1479
  %v1702 = vmax.f32 %v1574, %v1480
  %v1703 = vmax.f32 %v1575, %v1481
  %v1704 = vmax.f32 %v1576, %v1482
  %v1705 = vmax.f32 %v1577, %v1483
  %v1706 = vmax.f32 %v1578, %v1484
  %v1707 = vmax.f32 %v1579, %v1485
  %v1708 = vmax.f32 %v1580, %v1486
  %v1709 = vmax.f32 %v1581, %v1487
  %v1710 = vmax.f32 %v1582, %v1488
  %v1711 = vmax.f32 %v1583, %v1489
  %v1712 = vmax.f32 %v1584, %v1490
  %v1713 = vmax.f32 %v1585, %v1491
  %v1714 = vmax.f32 %v1586, %v1492
  %v1715 = vmax.f32 %v1587, %v1493
  %v1716 = vmax.f32 %v1588, %v1494
  %v1717 = vmax.f32 %v1589, %v1495
  %v1718 = vmax.f32 %v1590, %v1496
  %v1719 = vmax.f32 %v1591, %v1497
  %v1720 = vmax.f32 %v1592, %v1498
  %v1721 = vmax.f32 %v1593, %v1469
  %v1722 = vmax.f32 %v1594, %v1470
  %v1723 = vmax.f32 %v1691, %v1659
  %v1724 = vmax.f32 %v1692, %v1660
  %v1725 = vmax.f32 %v1693, %v1661
  %v1726 = vmax.f32 %v1694, %v1662
  %v1727 = vmax.f32 %v1695, %v1663
  %v1728 = vmax.f32 %v1696, %v1664
  %v1729 = vmax.f32 %v1697, %v1665
  %v1730 = vmax.f32 %v1698, %v1666
  %v1731 = vmax.f32 %v1699, %v1667
  %v1732 = vmax.f32 %v1700, %v1668
  %v1733 = vmax.f32 %v1701, %v1669
  %v1734 = vmax.f32 %v1702, %v1670
  %v1735 = vmax.f32 %v1703, %v1671
  %v1736 = vmax.f32 %v1704, %v1672
  %v1737 = vmax.f32 %v1705, %v1673
  %v1738 = vmax.f32 %v1706, %v1674
  %v1739 = vmax.f32 %v1707, %v1675
  %v1740 = vmax.f32 %v1708, %v1676
  %v1741 = vmax.f32 %v1709, %v1677
  %v1742 = vmax.f32 %v1710, %v1678
  %v1743 = vmax.f32 %v1711, %v1679
  %v1744 = vmax.f32 %v1712, %v1680
  %v1745 = vmax.f32 %v1713, %v1681
  %v1746 = vmax.f32 %v1714, %v1682
  %v1747 = vmax.f32 %v1715, %v1683
  %v1748 = vmax.f32 %v1716, %v1684
  %v1749 = vmax.f32 %v1717, %v1685
  %v1750 = vmax.f32 %v1718, %v1686
  %v1751 = vmax.f32 %v1719, %v1687
  %v1752 = vmax.f32 %v1720, %v1688
  %v1753 = vmax.f32 %v1721, %v1689
  %v1754 = vmax.f32 %v1722, %v1690
  %v1755 = vadd.f32 %v1723, %v1409
  %v1756 = vadd.f32 %v1724, %v1410
  %v1757 = vadd.f32 %v1725, %v1411
  %v1758 = vadd.f32 %v1726, %v1412
  %v1759 = vadd.f32 %v1727, %v1413
  %v1760 = vadd.f32 %v1728, %v1414
  %v1761 = vadd.f32 %v1729, %v1415
  %v1762 = vadd.f32 %v1730, %v1416
  %v1763 = vadd.f32 %v1731, %v1417
  %v1764 = vadd.f32 %v1732, %v1418
  %v1765 = vadd.f32 %v1733, %v1419
  %v1766 = vadd.f32 %v1734, %v1420
  %v1767 = vadd.f32 %v1735, %v1421
  %v1768 = vadd.f32 %v1736, %v1422
  %v1769 = vadd.f32 %v1737, %v1423
  %v1770 = vadd.f32 %v1738, %v1424
  %v1771 = vadd.f32 %v1739, %v1425
  %v1772 = vadd.f32 %v1740, %v1426
  %v1773 = vadd.f32 %v1741, %v1427
  %v1774 = vadd.f32 %v1742, %v1428
  %v1775 = vadd.f32 %v1743, %v1429
  %v1776 = vadd.f32 %v1744, %v1430
  %v1777 = vadd.f32 %v1745, %v1431
  %v1778 = vadd.f32 %v1746, %v1432
  %v1779 = vadd.f32 %v1747, %v1433
  %v1780 = vadd.f32 %v1748, %v1434
  %v1781 = vadd.f32 %v1749, %v1435
  %v1782 = vadd.f32 %v1750, %v1436
  %v1783 = vadd.f32 %v1751, %v1437
  %v1784 = vadd.f32 %v1752, %v1438
  %v1785 = vadd.f32 %v1753, %v1439
  %v1786 = vadd.f32 %v1754, %v1440
  %vm1787 = vcmask 64512
  %1788 = vst.msk [vmem:[%s1] sm:$0xff] %vm1787, %v1755
  %1789 = vst.msk [vmem:[%s1 + $0x8] sm:$0xff] %vm1787, %v1756
  %1790 = vst.msk [vmem:[%s1 + $0x10] sm:$0xff] %vm1787, %v1757
  %1791 = vst.msk [vmem:[%s1 + $0x18] sm:$0xff] %vm1787, %v1758
  %1792 = vst.msk [vmem:[%s1 + $0x20] sm:$0xff] %vm1787, %v1759
  %1793 = vst.msk [vmem:[%s1 + $0x28] sm:$0xff] %vm1787, %v1760
  %1794 = vst.msk [vmem:[%s1 + $0x30] sm:$0xff] %vm1787, %v1761
  %1795 = vst.msk [vmem:[%s1 + $0x38] sm:$0xff] %vm1787, %v1762
  %1796 = vst.msk [vmem:[%s1 + $0x40] sm:$0xff] %vm1787, %v1763
  %1797 = vst.msk [vmem:[%s1 + $0x48] sm:$0xff] %vm1787, %v1764
  %1798 = vst.msk [vmem:[%s1 + $0x50] sm:$0xff] %vm1787, %v1765
  %1799 = vst.msk [vmem:[%s1 + $0x58] sm:$0xff] %vm1787, %v1766
  %1800 = vst.msk [vmem:[%s1 + $0x60] sm:$0xff] %vm1787, %v1767
  %1801 = vst.msk [vmem:[%s1 + $0x68] sm:$0xff] %vm1787, %v1768
  %1802 = vst.msk [vmem:[%s1 + $0x70] sm:$0xff] %vm1787, %v1769
  %1803 = vst.msk [vmem:[%s1 + $0x78] sm:$0xff] %vm1787, %v1770
  %1804 = vst.msk [vmem:[%s1 + $0x80] sm:$0xff] %vm1787, %v1771
  %1805 = vst.msk [vmem:[%s1 + $0x88] sm:$0xff] %vm1787, %v1772
  %1806 = vst.msk [vmem:[%s1 + $0x90] sm:$0xff] %vm1787, %v1773
  %1807 = vst.msk [vmem:[%s1 + $0x98] sm:$0xff] %vm1787, %v1774
  %1808 = vst.msk [vmem:[%s1 + $0xa0] sm:$0xff] %vm1787, %v1775
  %1809 = vst.msk [vmem:[%s1 + $0xa8] sm:$0xff] %vm1787, %v1776
  %1810 = vst.msk [vmem:[%s1 + $0xb0] sm:$0xff] %vm1787, %v1777
  %1811 = vst.msk [vmem:[%s1 + $0xb8] sm:$0xff] %vm1787, %v1778
  %1812 = vst.msk [vmem:[%s1 + $0xc0] sm:$0xff] %vm1787, %v1779
  %1813 = vst.msk [vmem:[%s1 + $0xc8] sm:$0xff] %vm1787, %v1780
  %1814 = vst.msk [vmem:[%s1 + $0xd0] sm:$0xff] %vm1787, %v1781
  %1815 = vst.msk [vmem:[%s1 + $0xd8] sm:$0xff] %vm1787, %v1782
  %1816 = vst.msk [vmem:[%s1 + $0xe0] sm:$0xff] %vm1787, %v1783
  %1817 = vst.msk [vmem:[%s1 + $0xe8] sm:$0xff] %vm1787, %v1784
  %1818 = vst.msk [vmem:[%s1 + $0xf0] sm:$0xff] %vm1787, %v1785
  %1819 = vst.msk [vmem:[%s1 + $0xf8] sm:$0xff] %vm1787, %v1786
  // Predicated region
  $region6: #{tpu_custom_call.1} parent=0 // pred_check
    _
  $region7: #{tpu_custom_call.1} parent=0 // pred_check_branch
    %1821 = sbr.rel (0) target = $region9
  $region8: #{tpu_custom_call.1} parent=0 // pred_region
    _
  $region9: #{tpu_custom_call.1} parent=0 // pred_fallthru
    _
  // Predicated region
  $region10: #{tpu_custom_call.1} parent=0 // pred_check
    _
  $region11: #{tpu_custom_call.1} parent=0 // pred_check_branch
    %1823 = sbr.rel (0) target = $region13
  $region12: #{tpu_custom_call.1} parent=0 // pred_region
    _
  $region13: #{tpu_custom_call.1} parent=0 // pred_fallthru
    _

</llo_original>
